<compile_context>
chip_gen: v5e
topology: v5e:2x2
jax: 0.10.0
libtpu: 0.0.40
codegen_flags: <defaults>
</compile_context>

<pallas_src>
import functools

import jax
import jax.numpy as jnp
from jax.experimental import pallas as pl
from jax.experimental.pallas import tpu as pltpu


def _round_up(a, b):
    return (a + b - 1) // b * b


def _cdiv(a, b):
    return -(-a // b)


# ----------------------------------------------------------------------------
# Kernel: fused 3-layer pointwise MLP, channels-major  (3 -> 64 -> 128 -> 1024)
# ----------------------------------------------------------------------------
def _mlp3_kernel(x_ref,
                 w1_ref, b1_ref,
                 w2_ref, b2_ref,
                 w3_ref, b3_ref,
                 o_ref):
    xb = x_ref[0]                      # (3, tn)  f32
    w1 = w1_ref[...]                   # (64, 3)  f32, BN scale folded in

    # Layer 1: 3 -> 64.  K=3 would waste a full MXU pass; do three broadcast
    # FMAs on the VPU instead (VPU has slack at this arithmetic intensity).
    z1 = (w1[:, 0:1] * xb[0:1, :]
          + w1[:, 1:2] * xb[1:2, :]
          + w1[:, 2:3] * xb[2:3, :]
          + b1_ref[...])               # (64, tn)
    h1 = jnp.maximum(z1, 0.0).astype(jnp.bfloat16)

    # Layer 2: 64 -> 128 on the MXU (bf16 operands, f32 accumulation).
    z2 = jnp.dot(w2_ref[...], h1, preferred_element_type=jnp.float32)
    h2 = jnp.maximum(z2 + b2_ref[...], 0.0).astype(jnp.bfloat16)

    # Layer 3: 128 -> 1024 on the MXU, no ReLU.  Chunk over C_out so the live
    # f32 accumulator is (256, tn) instead of (1024, tn)  (VMEM / spill relief).
    c_out = w3_ref.shape[0]
    chunk = 256
    for c in range(0, c_out, chunk):   # static Python loop -> fully unrolled
        z3 = jnp.dot(w3_ref[c:c + chunk, :], h2,
                     preferred_element_type=jnp.float32)
        o_ref[0, c:c + chunk, :] = (z3 + b3_ref[c:c + chunk, :]).astype(o_ref.dtype)


def _const_spec(shape):
    # Small parameter block resident for every grid step (constant index_map).
    return pl.BlockSpec(shape, lambda b, j: tuple(0 for _ in shape))


def _choose_tn(tn_req, N, B):
    """Pick a lane-dense column tile; keep ragged work only in the final block."""
    if N < 128:
        return N                                   # single exact-width block
    tn = _round_up(max(128, min(tn_req, N)), 128)
    tn = min(tn, (N // 128) * 128)                 # never wider than the array
    # v7x has 2 TensorCores: with B == 1 keep >= 2 column tiles so the grid can
    # still be sharded across both cores.
    if B == 1 and N >= 256:
        tn = min(tn, _round_up(_cdiv(N, 2), 128))
    return max(tn, 128)


@functools.partial(jax.jit, static_argnames=("tn", "vmem_limit_bytes", "out_dtype"))
def n_views_mlp_for_3d(x, params, tn=1024, vmem_limit_bytes=40 * 1024 * 1024,
                       out_dtype=jnp.float32):
    """x: (B, 3, 1, N) float32 -> (B, 1024, N) out_dtype (default f32)."""
    B, C_in, one, N = x.shape
    assert one == 1 and C_in == 3

    w1, b1 = params["w1"], params["b1"]    # (64, 3)     f32 , (64, 1)   f32
    w2, b2 = params["w2"], params["b2"]    # (128, 64)   bf16, (128, 1)  f32
    w3, b3 = params["w3"], params["b3"]    # (1024, 128) bf16, (1024, 1) f32
    C_out = w3.shape[0]

    x3 = x[:, :, 0, :]                     # (B, 3, N) -- free squeeze

    tn = _choose_tn(tn, N, B)
    grid_j = _cdiv(N, tn)
    N_pad = grid_j * tn
    if N_pad != N:
        # Cheap pad of the tiny (B, 3, N) input so every *input* block is full;
        # the output keeps its exact shape and Pallas masks the ragged final
        # output block on writeback (no post-kernel slice copy).
        x3 = jnp.pad(x3, ((0, 0), (0, 0), (0, N_pad - N)))

    out = pl.pallas_call(
        _mlp3_kernel,
        out_shape=jax.ShapeDtypeStruct((B, C_out, N), out_dtype),
        grid_spec=pltpu.PrefetchScalarGridSpec(
            num_scalar_prefetch=0,
            grid=(B, grid_j),
            in_specs=[
                pl.BlockSpec((1, C_in, tn), lambda b, j: (b, 0, j)),
                _const_spec(w1.shape), _const_spec(b1.shape),
                _const_spec(w2.shape), _const_spec(b2.shape),
                _const_spec(w3.shape), _const_spec(b3.shape),
            ],
            out_specs=pl.BlockSpec((1, C_out, tn), lambda b, j: (b, 0, j)),
        ),
        compiler_params=pltpu.CompilerParams(
            dimension_semantics=("parallel", "parallel"),
            vmem_limit_bytes=vmem_limit_bytes),
    )(x3, w1, b1, w2, b2, w3, b3)

    return out                             # (B, 1024, N), exact -- no slice


# ----------------------------------------------------------------------------
# Deterministic parameter construction (Conv1d + eval-mode BatchNorm1d).
# BN scale folded into the weights; conv bias + BN shift folded into b.
# ----------------------------------------------------------------------------
def make_params(key, eps=1e-5):
    """Returns exact f32 folded params: w{k}: (C_out, C_in), b{k}: (C_out, 1)."""
    dims = [3, 64, 128, 1024]
    params = {}
    for li in range(3):
        cin, cout = dims[li], dims[li + 1]
        key, kw, kb, kg, kbt, km, kv = jax.random.split(key, 7)
        w_conv = jax.random.normal(kw, (cout, cin), jnp.float32) * 0.05
        b_conv = jax.random.normal(kb, (cout,), jnp.float32) * 0.05
        gamma = 1.0 + 0.1 * jax.random.normal(kg, (cout,), jnp.float32)
        beta = 0.1 * jax.random.normal(kbt, (cout,), jnp.float32)
        mean = 0.1 * jax.random.normal(km, (cout,), jnp.float32)
        var = jnp.abs(jax.random.normal(kv, (cout,), jnp.float32)) + 0.5
        scale = gamma / jnp.sqrt(var + eps)           # BN (eval) scale
        shift = (b_conv - mean) * scale + beta        # conv bias + BN shift
        params[f"w{li+1}"] = w_conv * scale[:, None]  # scale folded into weights
        params[f"b{li+1}"] = shift.reshape(cout, 1)   # column for channels-major
    return params


def prep_kernel_params(p):
    """bf16 weights for the MXU layers (f32 accumulation in-kernel)."""
    return {
        "w1": p["w1"],                          # layer 1 stays f32 (VPU path)
        "b1": p["b1"],
        "w2": p["w2"].astype(jnp.bfloat16),
        "b2": p["b2"],
        "w3": p["w3"].astype(jnp.bfloat16),
        "b3": p["b3"],
    }


def reference(x, p):
    """Exact f32 reference of the module's forward pass."""
    h = x[:, :, 0, :]                                                  # (B, 3, N)
    h = jnp.maximum(jnp.einsum("oc,bcn->bon", p["w1"], h) + p["b1"][None], 0.0)
    h = jnp.maximum(jnp.einsum("oc,bcn->bon", p["w2"], h) + p["b2"][None], 0.0)
    return jnp.einsum("oc,bcn->bon", p["w3"], h) + p["b3"][None]       # (B,1024,N)


if __name__ == "__main__":
    key = jax.random.PRNGKey(0)
    kx1, kx2, kp = jax.random.split(key, 3)

    params_f32 = make_params(kp)
    kernel_params = prep_kernel_params(params_f32)

    # Case 1: small N (< 128) -> single exact-width block, no padding.
    B1, N1 = 2, 16
    x1 = jax.random.normal(kx1, (B1, 3, 1, N1), jnp.float32)
    out1 = jax.block_until_ready(n_views_mlp_for_3d(x1, kernel_params))
    assert out1.shape == (B1, 1024, N1), out1.shape
    err1 = float(jnp.max(jnp.abs(out1 - reference(x1, params_f32))))
    # Layers 2/3 use bf16 operands with f32 accumulation -> loosen tolerance
    # vs. the exact f32 reference (outputs are O(0.1-0.5); error is ~1e-3).
    assert err1 < 1e-2, err1

    # Case 2: N % 128 != 0 and N % tn != 0, B == 1 -> exercises the masked
    # (ragged) final output block and the B==1 tile-split path.
    B2, N2 = 1, 200
    x2 = jax.random.normal(kx2, (B2, 3, 1, N2), jnp.float32)
    out2 = jax.block_until_ready(n_views_mlp_for_3d(x2, kernel_params))
    assert out2.shape == (B2, 1024, N2), out2.shape
    err2 = float(jnp.max(jnp.abs(out2 - reference(x2, params_f32))))
    assert err2 < 1e-2, err2

    print("KERNEL_OK")
</pallas_src>

<mosaic_0001>
module attributes {stable_mosaic.version = 11 : i64} {
  func.func @_mlp3_kernel(%arg0: i32, %arg1: i32, %arg2: memref<1x3x16xf32, #tpu.memory_space<vmem>>, %arg3: memref<64x3xf32, #tpu.memory_space<vmem>>, %arg4: memref<64x1xf32, #tpu.memory_space<vmem>>, %arg5: memref<128x64xbf16, #tpu.memory_space<vmem>>, %arg6: memref<128x1xf32, #tpu.memory_space<vmem>>, %arg7: memref<1024x128xbf16, #tpu.memory_space<vmem>>, %arg8: memref<1024x1xf32, #tpu.memory_space<vmem>>, %arg9: memref<1x1024x16xf32, #tpu.memory_space<vmem>>) attributes {dimension_semantics = [#tpu.dimension_semantics<parallel>, #tpu.dimension_semantics<parallel>], iteration_bounds = array<i64: 2, 1>, scalar_prefetch = 0 : i64, scratch_operands = 0 : i64, tpu.core_type = #tpu.core_type<tc>, window_params = [{transform_indices = @transform_0, window_bounds = array<i64: 1, 3, 16>}, {pipeline_mode = #tpu.pipeline_mode<synchronous>, transform_indices = @transform_1, window_bounds = array<i64: 64, 3>}, {pipeline_mode = #tpu.pipeline_mode<synchronous>, transform_indices = @transform_2, window_bounds = array<i64: 64, 1>}, {pipeline_mode = #tpu.pipeline_mode<synchronous>, transform_indices = @transform_3, window_bounds = array<i64: 128, 64>}, {pipeline_mode = #tpu.pipeline_mode<synchronous>, transform_indices = @transform_4, window_bounds = array<i64: 128, 1>}, {pipeline_mode = #tpu.pipeline_mode<synchronous>, transform_indices = @transform_5, window_bounds = array<i64: 1024, 128>}, {pipeline_mode = #tpu.pipeline_mode<synchronous>, transform_indices = @transform_6, window_bounds = array<i64: 1024, 1>}, {transform_indices = @transform_7, window_bounds = array<i64: 1, 1024, 16>}]} {
    %c0 = arith.constant 0 : index
    %c0_0 = arith.constant 0 : index
    %c0_1 = arith.constant 0 : index
    %0 = vector.load %arg2[%c0, %c0_0, %c0_1] : memref<1x3x16xf32, #tpu.memory_space<vmem>>, vector<1x3x16xf32>
    %1 = vector.shape_cast %0 : vector<1x3x16xf32> to vector<3x16xf32>
    %c0_2 = arith.constant 0 : index
    %c0_3 = arith.constant 0 : index
    %2 = vector.load %arg3[%c0_2, %c0_3] : memref<64x3xf32, #tpu.memory_space<vmem>>, vector<64x3xf32>
    %3 = vector.extract_strided_slice %2 {offsets = [0, 0], sizes = [64, 1], strides = [1, 1]} : vector<64x3xf32> to vector<64x1xf32>
    %4 = vector.extract_strided_slice %1 {offsets = [0, 0], sizes = [1, 16], strides = [1, 1]} : vector<3x16xf32> to vector<1x16xf32>
    %5 = vector.broadcast %3 : vector<64x1xf32> to vector<64x16xf32>
    %6 = vector.broadcast %4 : vector<1x16xf32> to vector<64x16xf32>
    %7 = arith.mulf %5, %6 : vector<64x16xf32>
    %8 = vector.extract_strided_slice %2 {offsets = [0, 1], sizes = [64, 1], strides = [1, 1]} : vector<64x3xf32> to vector<64x1xf32>
    %9 = vector.extract_strided_slice %1 {offsets = [1, 0], sizes = [1, 16], strides = [1, 1]} : vector<3x16xf32> to vector<1x16xf32>
    %10 = vector.broadcast %8 : vector<64x1xf32> to vector<64x16xf32>
    %11 = vector.broadcast %9 : vector<1x16xf32> to vector<64x16xf32>
    %12 = arith.mulf %10, %11 : vector<64x16xf32>
    %13 = arith.addf %7, %12 : vector<64x16xf32>
    %14 = vector.extract_strided_slice %2 {offsets = [0, 2], sizes = [64, 1], strides = [1, 1]} : vector<64x3xf32> to vector<64x1xf32>
    %15 = vector.extract_strided_slice %1 {offsets = [2, 0], sizes = [1, 16], strides = [1, 1]} : vector<3x16xf32> to vector<1x16xf32>
    %16 = vector.broadcast %14 : vector<64x1xf32> to vector<64x16xf32>
    %17 = vector.broadcast %15 : vector<1x16xf32> to vector<64x16xf32>
    %18 = arith.mulf %16, %17 : vector<64x16xf32>
    %19 = arith.addf %13, %18 : vector<64x16xf32>
    %c0_4 = arith.constant 0 : index
    %c0_5 = arith.constant 0 : index
    %20 = vector.load %arg4[%c0_4, %c0_5] : memref<64x1xf32, #tpu.memory_space<vmem>>, vector<64x1xf32>
    %21 = vector.broadcast %20 : vector<64x1xf32> to vector<64x16xf32>
    %22 = arith.addf %19, %21 : vector<64x16xf32>
    %cst = arith.constant 0.000000e+00 : f32
    %23 = vector.broadcast %cst : f32 to vector<64x16xf32>
    %24 = arith.maximumf %22, %23 : vector<64x16xf32>
    %25 = arith.truncf %24 : vector<64x16xf32> to vector<64x16xbf16>
    %c0_6 = arith.constant 0 : index
    %c0_7 = arith.constant 0 : index
    %26 = vector.load %arg5[%c0_6, %c0_7] : memref<128x64xbf16, #tpu.memory_space<vmem>>, vector<128x64xbf16>
    %cst_8 = arith.constant dense<0.000000e+00> : vector<128x16xf32>
    %27 = tpu.matmul %26, %25, %cst_8 {dimension_numbers = #tpu.dot_dimension_numbers<[1], [0], [0], [1], [0, 0, 1, 1], [], []>} : vector<128x64xbf16>, vector<64x16xbf16>, vector<128x16xf32> -> vector<128x16xf32>
    %c0_9 = arith.constant 0 : index
    %c0_10 = arith.constant 0 : index
    %28 = vector.load %arg6[%c0_9, %c0_10] : memref<128x1xf32, #tpu.memory_space<vmem>>, vector<128x1xf32>
    %29 = vector.broadcast %28 : vector<128x1xf32> to vector<128x16xf32>
    %30 = arith.addf %27, %29 : vector<128x16xf32>
    %cst_11 = arith.constant 0.000000e+00 : f32
    %31 = vector.broadcast %cst_11 : f32 to vector<128x16xf32>
    %32 = arith.maximumf %30, %31 : vector<128x16xf32>
    %33 = arith.truncf %32 : vector<128x16xf32> to vector<128x16xbf16>
    %c0_12 = arith.constant 0 : index
    %c0_13 = arith.constant 0 : index
    %34 = vector.load %arg7[%c0_12, %c0_13] : memref<1024x128xbf16, #tpu.memory_space<vmem>>, vector<256x128xbf16>
    %cst_14 = arith.constant dense<0.000000e+00> : vector<256x16xf32>
    %35 = tpu.matmul %34, %33, %cst_14 {dimension_numbers = #tpu.dot_dimension_numbers<[1], [0], [0], [1], [0, 0, 1, 1], [], []>} : vector<256x128xbf16>, vector<128x16xbf16>, vector<256x16xf32> -> vector<256x16xf32>
    %c0_15 = arith.constant 0 : index
    %c0_16 = arith.constant 0 : index
    %36 = vector.load %arg8[%c0_15, %c0_16] : memref<1024x1xf32, #tpu.memory_space<vmem>>, vector<256x1xf32>
    %37 = vector.broadcast %36 : vector<256x1xf32> to vector<256x16xf32>
    %38 = arith.addf %35, %37 : vector<256x16xf32>
    %c0_17 = arith.constant 0 : index
    %c0_18 = arith.constant 0 : index
    %c0_19 = arith.constant 0 : index
    %39 = vector.load %arg9[%c0_17, %c0_18, %c0_19] : memref<1x1024x16xf32, #tpu.memory_space<vmem>>, vector<1x256x16xf32>
    %40 = vector.shape_cast %39 : vector<1x256x16xf32> to vector<256x16xf32>
    %41 = vector.shape_cast %38 : vector<256x16xf32> to vector<1x256x16xf32>
    tpu.vector_store %arg9[%c0_17, %c0_18, %c0_19], %41 {strides = array<i32>} : memref<1x1024x16xf32, #tpu.memory_space<vmem>>, vector<1x256x16xf32>,
    %c256 = arith.constant 256 : index
    %c0_20 = arith.constant 0 : index
    %42 = vector.load %arg7[%c256, %c0_20] : memref<1024x128xbf16, #tpu.memory_space<vmem>>, vector<256x128xbf16>
    %cst_21 = arith.constant dense<0.000000e+00> : vector<256x16xf32>
    %43 = tpu.matmul %42, %33, %cst_21 {dimension_numbers = #tpu.dot_dimension_numbers<[1], [0], [0], [1], [0, 0, 1, 1], [], []>} : vector<256x128xbf16>, vector<128x16xbf16>, vector<256x16xf32> -> vector<256x16xf32>
    %c256_22 = arith.constant 256 : index
    %c0_23 = arith.constant 0 : index
    %44 = vector.load %arg8[%c256_22, %c0_23] : memref<1024x1xf32, #tpu.memory_space<vmem>>, vector<256x1xf32>
    %45 = vector.broadcast %44 : vector<256x1xf32> to vector<256x16xf32>
    %46 = arith.addf %43, %45 : vector<256x16xf32>
    %c0_24 = arith.constant 0 : index
    %c256_25 = arith.constant 256 : index
    %c0_26 = arith.constant 0 : index
    %47 = vector.load %arg9[%c0_24, %c256_25, %c0_26] : memref<1x1024x16xf32, #tpu.memory_space<vmem>>, vector<1x256x16xf32>
    %48 = vector.shape_cast %47 : vector<1x256x16xf32> to vector<256x16xf32>
    %49 = vector.shape_cast %46 : vector<256x16xf32> to vector<1x256x16xf32>
    tpu.vector_store %arg9[%c0_24, %c256_25, %c0_26], %49 {strides = array<i32>} : memref<1x1024x16xf32, #tpu.memory_space<vmem>>, vector<1x256x16xf32>,
    %c512 = arith.constant 512 : index
    %c0_27 = arith.constant 0 : index
    %50 = vector.load %arg7[%c512, %c0_27] : memref<1024x128xbf16, #tpu.memory_space<vmem>>, vector<256x128xbf16>
    %cst_28 = arith.constant dense<0.000000e+00> : vector<256x16xf32>
    %51 = tpu.matmul %50, %33, %cst_28 {dimension_numbers = #tpu.dot_dimension_numbers<[1], [0], [0], [1], [0, 0, 1, 1], [], []>} : vector<256x128xbf16>, vector<128x16xbf16>, vector<256x16xf32> -> vector<256x16xf32>
    %c512_29 = arith.constant 512 : index
    %c0_30 = arith.constant 0 : index
    %52 = vector.load %arg8[%c512_29, %c0_30] : memref<1024x1xf32, #tpu.memory_space<vmem>>, vector<256x1xf32>
    %53 = vector.broadcast %52 : vector<256x1xf32> to vector<256x16xf32>
    %54 = arith.addf %51, %53 : vector<256x16xf32>
    %c0_31 = arith.constant 0 : index
    %c512_32 = arith.constant 512 : index
    %c0_33 = arith.constant 0 : index
    %55 = vector.load %arg9[%c0_31, %c512_32, %c0_33] : memref<1x1024x16xf32, #tpu.memory_space<vmem>>, vector<1x256x16xf32>
    %56 = vector.shape_cast %55 : vector<1x256x16xf32> to vector<256x16xf32>
    %57 = vector.shape_cast %54 : vector<256x16xf32> to vector<1x256x16xf32>
    tpu.vector_store %arg9[%c0_31, %c512_32, %c0_33], %57 {strides = array<i32>} : memref<1x1024x16xf32, #tpu.memory_space<vmem>>, vector<1x256x16xf32>,
    %c768 = arith.constant 768 : index
    %c0_34 = arith.constant 0 : index
    %58 = vector.load %arg7[%c768, %c0_34] : memref<1024x128xbf16, #tpu.memory_space<vmem>>, vector<256x128xbf16>
    %cst_35 = arith.constant dense<0.000000e+00> : vector<256x16xf32>
    %59 = tpu.matmul %58, %33, %cst_35 {dimension_numbers = #tpu.dot_dimension_numbers<[1], [0], [0], [1], [0, 0, 1, 1], [], []>} : vector<256x128xbf16>, vector<128x16xbf16>, vector<256x16xf32> -> vector<256x16xf32>
    %c768_36 = arith.constant 768 : index
    %c0_37 = arith.constant 0 : index
    %60 = vector.load %arg8[%c768_36, %c0_37] : memref<1024x1xf32, #tpu.memory_space<vmem>>, vector<256x1xf32>
    %61 = vector.broadcast %60 : vector<256x1xf32> to vector<256x16xf32>
    %62 = arith.addf %59, %61 : vector<256x16xf32>
    %c0_38 = arith.constant 0 : index
    %c768_39 = arith.constant 768 : index
    %c0_40 = arith.constant 0 : index
    %63 = vector.load %arg9[%c0_38, %c768_39, %c0_40] : memref<1x1024x16xf32, #tpu.memory_space<vmem>>, vector<1x256x16xf32>
    %64 = vector.shape_cast %63 : vector<1x256x16xf32> to vector<256x16xf32>
    %65 = vector.shape_cast %62 : vector<256x16xf32> to vector<1x256x16xf32>
    tpu.vector_store %arg9[%c0_38, %c768_39, %c0_40], %65 {strides = array<i32>} : memref<1x1024x16xf32, #tpu.memory_space<vmem>>, vector<1x256x16xf32>,
    return
  }
  func.func @transform_0(%arg0: i32, %arg1: i32) -> (i32, i32, i32) {
    %c0_i32 = arith.constant 0 : i32
    %c0_i32_0 = arith.constant 0 : i32
    return %arg0, %c0_i32, %arg1 : i32, i32, i32
  }
  func.func @transform_1(%arg0: i32, %arg1: i32) -> (i32, i32) {
    %c0_i32 = arith.constant 0 : i32
    %c0_i32_0 = arith.constant 0 : i32
    %c0_i32_1 = arith.constant 0 : i32
    return %c0_i32, %c0_i32_0 : i32, i32
  }
  func.func @transform_2(%arg0: i32, %arg1: i32) -> (i32, i32) {
    %c0_i32 = arith.constant 0 : i32
    %c0_i32_0 = arith.constant 0 : i32
    %c0_i32_1 = arith.constant 0 : i32
    return %c0_i32, %c0_i32_0 : i32, i32
  }
  func.func @transform_3(%arg0: i32, %arg1: i32) -> (i32, i32) {
    %c0_i32 = arith.constant 0 : i32
    %c0_i32_0 = arith.constant 0 : i32
    %c0_i32_1 = arith.constant 0 : i32
    return %c0_i32, %c0_i32_0 : i32, i32
  }
  func.func @transform_4(%arg0: i32, %arg1: i32) -> (i32, i32) {
    %c0_i32 = arith.constant 0 : i32
    %c0_i32_0 = arith.constant 0 : i32
    %c0_i32_1 = arith.constant 0 : i32
    return %c0_i32, %c0_i32_0 : i32, i32
  }
  func.func @transform_5(%arg0: i32, %arg1: i32) -> (i32, i32) {
    %c0_i32 = arith.constant 0 : i32
    %c0_i32_0 = arith.constant 0 : i32
    %c0_i32_1 = arith.constant 0 : i32
    return %c0_i32, %c0_i32_0 : i32, i32
  }
  func.func @transform_6(%arg0: i32, %arg1: i32) -> (i32, i32) {
    %c0_i32 = arith.constant 0 : i32
    %c0_i32_0 = arith.constant 0 : i32
    %c0_i32_1 = arith.constant 0 : i32
    return %c0_i32, %c0_i32_0 : i32, i32
  }
  func.func @transform_7(%arg0: i32, %arg1: i32) -> (i32, i32, i32) {
    %c0_i32 = arith.constant 0 : i32
    %c0_i32_0 = arith.constant 0 : i32
    return %arg0, %c0_i32, %arg1 : i32, i32, i32
  }
}

</mosaic_0001>

<llo_original>
// kernel: n_views_mlp_for_3d.1
$region0: #{n_views_mlp_for_3d.1}
  #allocation0 [shape = 'u32[]', space=smem, size = 0x4, offset = 0x4, fixed_abs, tag = 'smem constant byte address 0x4 - core index']
  #allocation1 [shape = 'u32[72,128]{1,0:T(1,128)}', space=vmem, size = 0x9000, scoped, tag = 'internal scratch']
  %s0 = inlined_call_operand.vmem [shape: f32[2,3,16], index: 0, kind: input, shape index: {}]
  %s1 = inlined_call_operand.vmem [shape: f32[64,3], index: 1, kind: input, shape index: {}]
  %s2 = inlined_call_operand.vmem [shape: f32[64,1], index: 2, kind: input, shape index: {}]
  %s3 = inlined_call_operand.vmem [shape: bf16[128,64], index: 3, kind: input, shape index: {}]
  %s4 = inlined_call_operand.vmem [shape: f32[128,1], index: 4, kind: input, shape index: {}]
  %s5 = inlined_call_operand.vmem [shape: bf16[1024,128], index: 5, kind: input, shape index: {}]
  %s6 = inlined_call_operand.vmem [shape: f32[1024,1], index: 6, kind: input, shape index: {}]
  %s7 = inlined_call_operand.vmem [shape: f32[2,1024,16], index: 7, kind: output, shape index: {}]
  %s8 = sld [smem:[#allocation0]]
  $region61: #{n_views_mlp_for_3d.1} parent=0
    _
  %s10 = ssub.s32 1, %s8
  %s11 = scalar_select 0, %s10, %s8
  loop: start=0, step=1, limit=4
  $region2: #{n_views_mlp_for_3d.1} parent=0 // loop_pre_header
    _
  $region3: #{n_views_mlp_for_3d.1} parent=0 // loop_header
    %s13 = sphi 0, %s17
    %p14 = scmp.ge.s32.totalorder %s13, 4
    %s20 = sphi 0, %s32
    %s21 = sphi 0, %s28
    %s22 = sphi 0, %s20
    %s23 = sphi 0, %s21
    %s24 = sphi 0, %s22
    %s25 = sphi 0, %s23
    %s37 = sphi 0, %s39
    %s40 = sphi 0, %s37
    %s41 = sphi 0, %s40
    %s57 = sphi 0, %s41
    %s61 = sphi 0, %s61
    %s63 = sphi 0, %s61
    %s64 = sphi 0, %s63
    %s78 = sphi 0, %s64
    %s82 = sphi 0, %s82
    %s84 = sphi 0, %s82
    %s85 = sphi 0, %s84
    %s99 = sphi 0, %s85
    %s103 = sphi 0, %s103
    %s105 = sphi 0, %s103
    %s106 = sphi 0, %s105
    %s120 = sphi 0, %s106
    %s124 = sphi 0, %s124
    %s126 = sphi 0, %s124
    %s127 = sphi 0, %s126
    %s141 = sphi 0, %s127
    %s145 = sphi 0, %s145
    %s147 = sphi 0, %s145
    %s148 = sphi 0, %s147
    %s162 = sphi 0, %s148
    %s166 = sphi 0, %s166
    %s168 = sphi 0, %s166
    %s169 = sphi 0, %s168
    %s183 = sphi 0, %s169
    %s191 = sphi 0, %s193
    %s194 = sphi 0, %s191
    %s195 = sphi 0, %s194
    %s211 = sphi 0, %s195
  $region4: #{n_views_mlp_for_3d.1} parent=0 // loop_header_branch
    %16 = sbr.rel (%p14) target = $region8
  $region5: #{n_views_mlp_for_3d.1} parent=0 // loop_body
    %s18 = ssub.s32 %s13, 1
    %s19 = ssub.s32 %s13, 2
    %s26 = sadd.s32 1, %s21
    %p27 = scmp.ge.s32.totalorder %s26, 1
    %s28 = scalar_select %p27, 0, %s26
    %s29 = sadd.s32 1, %s20
    %s30 = scalar_select %p27, %s29, %s20
    %p31 = scmp.ge.s32.totalorder %s30, 2
    %s32 = scalar_select %p31, 0, %s30
    %s33 = ssub.s32 %s20, %s32
    %s34 = ssub.s32 %s21, %s28
    %s35 = sor.u32 %s33, %s34
    %p36 = scmp.eq.s32.totalorder %s35, 0
    %s38 = sadd.s32 %s37, 1
    %s39 = scalar_select %p36, %s37, %s38
    %p42 = pneg %p36
    %p43 = scmp.eq.s32.totalorder %s13, 1
    %p44 = por %p42, %p43
    %p45 = scmp.ne.s32.totalorder %s37, %s40
    %p46 = scmp.eq.s32.totalorder %s13, 0
    %p47 = por %p45, %p46
    %p48 = scmp.ne.s32.totalorder %s37, %s40
    %p49 = scmp.eq.s32.totalorder %s18, 1
    %p50 = por %p48, %p49
    %p51 = scmp.ne.s32.totalorder %s40, %s41
    %p52 = scmp.eq.s32.totalorder %s18, 0
    %p53 = por %p51, %p52
    %p54 = scmp.ne.s32.totalorder %s40, %s41
    %p55 = scmp.eq.s32.totalorder %s19, 1
    %p56 = por %p54, %p55
    %p58 = scmp.ne.s32.totalorder %s41, %s57
    %p59 = scmp.eq.s32.totalorder %s19, 0
    %p60 = por %p58, %p59
    %s62 = sadd.s32 %s61, 1
    %p65 = scmp.eq.s32.totalorder %s13, 1
    %p66 = scmp.ne.s32.totalorder %s61, %s63
    %p67 = scmp.eq.s32.totalorder %s13, 0
    %p68 = por %p66, %p67
    %p69 = scmp.ne.s32.totalorder %s61, %s63
    %p70 = scmp.eq.s32.totalorder %s18, 1
    %p71 = por %p69, %p70
    %p72 = scmp.ne.s32.totalorder %s63, %s64
    %p73 = scmp.eq.s32.totalorder %s18, 0
    %p74 = por %p72, %p73
    %p75 = scmp.ne.s32.totalorder %s63, %s64
    %p76 = scmp.eq.s32.totalorder %s19, 1
    %p77 = por %p75, %p76
    %p79 = scmp.ne.s32.totalorder %s64, %s78
    %p80 = scmp.eq.s32.totalorder %s19, 0
    %p81 = por %p79, %p80
    %s83 = sadd.s32 %s82, 1
    %p86 = scmp.eq.s32.totalorder %s13, 1
    %p87 = scmp.ne.s32.totalorder %s82, %s84
    %p88 = scmp.eq.s32.totalorder %s13, 0
    %p89 = por %p87, %p88
    %p90 = scmp.ne.s32.totalorder %s82, %s84
    %p91 = scmp.eq.s32.totalorder %s18, 1
    %p92 = por %p90, %p91
    %p93 = scmp.ne.s32.totalorder %s84, %s85
    %p94 = scmp.eq.s32.totalorder %s18, 0
    %p95 = por %p93, %p94
    %p96 = scmp.ne.s32.totalorder %s84, %s85
    %p97 = scmp.eq.s32.totalorder %s19, 1
    %p98 = por %p96, %p97
    %p100 = scmp.ne.s32.totalorder %s85, %s99
    %p101 = scmp.eq.s32.totalorder %s19, 0
    %p102 = por %p100, %p101
    %s104 = sadd.s32 %s103, 1
    %p107 = scmp.eq.s32.totalorder %s13, 1
    %p108 = scmp.ne.s32.totalorder %s103, %s105
    %p109 = scmp.eq.s32.totalorder %s13, 0
    %p110 = por %p108, %p109
    %p111 = scmp.ne.s32.totalorder %s103, %s105
    %p112 = scmp.eq.s32.totalorder %s18, 1
    %p113 = por %p111, %p112
    %p114 = scmp.ne.s32.totalorder %s105, %s106
    %p115 = scmp.eq.s32.totalorder %s18, 0
    %p116 = por %p114, %p115
    %p117 = scmp.ne.s32.totalorder %s105, %s106
    %p118 = scmp.eq.s32.totalorder %s19, 1
    %p119 = por %p117, %p118
    %p121 = scmp.ne.s32.totalorder %s106, %s120
    %p122 = scmp.eq.s32.totalorder %s19, 0
    %p123 = por %p121, %p122
    %s125 = sadd.s32 %s124, 1
    %p128 = scmp.eq.s32.totalorder %s13, 1
    %p129 = scmp.ne.s32.totalorder %s124, %s126
    %p130 = scmp.eq.s32.totalorder %s13, 0
    %p131 = por %p129, %p130
    %p132 = scmp.ne.s32.totalorder %s124, %s126
    %p133 = scmp.eq.s32.totalorder %s18, 1
    %p134 = por %p132, %p133
    %p135 = scmp.ne.s32.totalorder %s126, %s127
    %p136 = scmp.eq.s32.totalorder %s18, 0
    %p137 = por %p135, %p136
    %p138 = scmp.ne.s32.totalorder %s126, %s127
    %p139 = scmp.eq.s32.totalorder %s19, 1
    %p140 = por %p138, %p139
    %p142 = scmp.ne.s32.totalorder %s127, %s141
    %p143 = scmp.eq.s32.totalorder %s19, 0
    %p144 = por %p142, %p143
    %s146 = sadd.s32 %s145, 1
    %p149 = scmp.eq.s32.totalorder %s13, 1
    %p150 = scmp.ne.s32.totalorder %s145, %s147
    %p151 = scmp.eq.s32.totalorder %s13, 0
    %p152 = por %p150, %p151
    %p153 = scmp.ne.s32.totalorder %s145, %s147
    %p154 = scmp.eq.s32.totalorder %s18, 1
    %p155 = por %p153, %p154
    %p156 = scmp.ne.s32.totalorder %s147, %s148
    %p157 = scmp.eq.s32.totalorder %s18, 0
    %p158 = por %p156, %p157
    %p159 = scmp.ne.s32.totalorder %s147, %s148
    %p160 = scmp.eq.s32.totalorder %s19, 1
    %p161 = por %p159, %p160
    %p163 = scmp.ne.s32.totalorder %s148, %s162
    %p164 = scmp.eq.s32.totalorder %s19, 0
    %p165 = por %p163, %p164
    %s167 = sadd.s32 %s166, 1
    %p170 = scmp.eq.s32.totalorder %s13, 1
    %p171 = scmp.ne.s32.totalorder %s166, %s168
    %p172 = scmp.eq.s32.totalorder %s13, 0
    %p173 = por %p171, %p172
    %p174 = scmp.ne.s32.totalorder %s166, %s168
    %p175 = scmp.eq.s32.totalorder %s18, 1
    %p176 = por %p174, %p175
    %p177 = scmp.ne.s32.totalorder %s168, %s169
    %p178 = scmp.eq.s32.totalorder %s18, 0
    %p179 = por %p177, %p178
    %p180 = scmp.ne.s32.totalorder %s168, %s169
    %p181 = scmp.eq.s32.totalorder %s19, 1
    %p182 = por %p180, %p181
    %p184 = scmp.ne.s32.totalorder %s169, %s183
    %p185 = scmp.eq.s32.totalorder %s19, 0
    %p186 = por %p184, %p185
    %s187 = ssub.s32 %s20, %s32
    %s188 = ssub.s32 %s21, %s28
    %s189 = sor.u32 %s187, %s188
    %p190 = scmp.eq.s32.totalorder %s189, 0
    %s192 = sadd.s32 %s191, 1
    %s193 = scalar_select %p190, %s191, %s192
    %p196 = pneg %p190
    %p197 = scmp.eq.s32.totalorder %s13, 1
    %p198 = por %p196, %p197
    %p199 = scmp.ne.s32.totalorder %s191, %s194
    %p200 = scmp.eq.s32.totalorder %s13, 0
    %p201 = por %p199, %p200
    %p202 = scmp.ne.s32.totalorder %s191, %s194
    %p203 = scmp.eq.s32.totalorder %s18, 1
    %p204 = por %p202, %p203
    %p205 = scmp.ne.s32.totalorder %s194, %s195
    %p206 = scmp.eq.s32.totalorder %s18, 0
    %p207 = por %p205, %p206
    %p208 = scmp.ne.s32.totalorder %s194, %s195
    %p209 = scmp.eq.s32.totalorder %s19, 1
    %p210 = por %p208, %p209
    %p212 = scmp.ne.s32.totalorder %s195, %s211
    %p213 = scmp.eq.s32.totalorder %s19, 0
    %p214 = por %p212, %p213
    %p215 = scmp.le.s32.totalorder 1, %s13
    %p216 = scmp.lt.s32.totalorder %s13, 3
    %p217 = pnand %p215, %p216
    %p218 = pneg %p217
    // Predicated region
    $region9: #{n_views_mlp_for_3d.1} parent=5 // pred_check
      _
    $region10: #{n_views_mlp_for_3d.1} parent=5 // pred_check_branch
      %220 = sbr.rel (%p217) target = $region12
    $region11: #{n_views_mlp_for_3d.1} parent=5 // pred_region
      %s221 = ssub.s32 %s13, 1
      // Predicated region
      $region13: #{n_views_mlp_for_3d.1} parent=11 // pred_check
        %p222 = pneg %p74
      $region14: #{n_views_mlp_for_3d.1} parent=11 // pred_check_branch
        %224 = sbr.rel (%p222) target = $region16
      $region15: #{n_views_mlp_for_3d.1} parent=11 // pred_region
        _
      $region16: #{n_views_mlp_for_3d.1} parent=11 // pred_fallthru
        _
      // Predicated region
      $region17: #{n_views_mlp_for_3d.1} parent=11 // pred_check
        %p225 = pneg %p95
      $region18: #{n_views_mlp_for_3d.1} parent=11 // pred_check_branch
        %227 = sbr.rel (%p225) target = $region20
      $region19: #{n_views_mlp_for_3d.1} parent=11 // pred_region
        _
      $region20: #{n_views_mlp_for_3d.1} parent=11 // pred_fallthru
        _
      // Predicated region
      $region21: #{n_views_mlp_for_3d.1} parent=11 // pred_check
        %p228 = pneg %p116
      $region22: #{n_views_mlp_for_3d.1} parent=11 // pred_check_branch
        %230 = sbr.rel (%p228) target = $region24
      $region23: #{n_views_mlp_for_3d.1} parent=11 // pred_region
        _
      $region24: #{n_views_mlp_for_3d.1} parent=11 // pred_fallthru
        _
      // Predicated region
      $region25: #{n_views_mlp_for_3d.1} parent=11 // pred_check
        %p231 = pneg %p137
      $region26: #{n_views_mlp_for_3d.1} parent=11 // pred_check_branch
        %233 = sbr.rel (%p231) target = $region28
      $region27: #{n_views_mlp_for_3d.1} parent=11 // pred_region
        _
      $region28: #{n_views_mlp_for_3d.1} parent=11 // pred_fallthru
        _
      // Predicated region
      $region29: #{n_views_mlp_for_3d.1} parent=11 // pred_check
        %p234 = pneg %p158
      $region30: #{n_views_mlp_for_3d.1} parent=11 // pred_check_branch
        %236 = sbr.rel (%p234) target = $region32
      $region31: #{n_views_mlp_for_3d.1} parent=11 // pred_region
        _
      $region32: #{n_views_mlp_for_3d.1} parent=11 // pred_fallthru
        _
      // Predicated region
      $region33: #{n_views_mlp_for_3d.1} parent=11 // pred_check
        %p237 = pneg %p179
      $region34: #{n_views_mlp_for_3d.1} parent=11 // pred_check_branch
        %239 = sbr.rel (%p237) target = $region36
      $region35: #{n_views_mlp_for_3d.1} parent=11 // pred_region
        _
      $region36: #{n_views_mlp_for_3d.1} parent=11 // pred_fallthru
        _
    $region12: #{n_views_mlp_for_3d.1} parent=5 // pred_fallthru
      _
    %p240 = scmp.lt.s32.totalorder %s13, 2
    // Predicated region
    $region37: #{n_views_mlp_for_3d.1} parent=5 // pred_check
      %p241 = pneg %p240
    $region38: #{n_views_mlp_for_3d.1} parent=5 // pred_check_branch
      %243 = sbr.rel (%p241) target = $region40
    $region39: #{n_views_mlp_for_3d.1} parent=5 // pred_region
      // Predicated region
      $region41: #{n_views_mlp_for_3d.1} parent=39 // pred_check
        %p244 = pneg %p47
      $region42: #{n_views_mlp_for_3d.1} parent=39 // pred_check_branch
        %246 = sbr.rel (%p244) target = $region44
      $region43: #{n_views_mlp_for_3d.1} parent=39 // pred_region
        %p247 = scmp.lt.s32.totalorder %s20, 1
        %s248 = scalar_select %p247, %s20, 1
        %p249 = scmp.lt.s32.totalorder %s21, 0
        %s250 = scalar_select %p249, %s21, 0
        %s251 = sadd.s32 %s250, %s248
        %s252 = smul.addr %s251, 4
        %s253 = scalar_lea.vmem %s0, %s252
      $region44: #{n_views_mlp_for_3d.1} parent=39 // pred_fallthru
        _
    $region40: #{n_views_mlp_for_3d.1} parent=5 // pred_fallthru
      _
    %p254 = scmp.le.s32.totalorder 1, %s13
    %p255 = scmp.lt.s32.totalorder %s13, 3
    %p256 = pnand %p254, %p255
    %p257 = pneg %p256
    // Predicated region
    $region45: #{n_views_mlp_for_3d.1} parent=5 // pred_check
      _
    $region46: #{n_views_mlp_for_3d.1} parent=5 // pred_check_branch
      %259 = sbr.rel (%p256) target = $region48
    $region47: #{n_views_mlp_for_3d.1} parent=5 // pred_region
      %s260 = ssub.s32 %s13, 1
      %p261 = scmp.lt.s32.totalorder %s22, 1
      %s262 = scalar_select %p261, %s22, 1
      %p263 = scmp.lt.s32.totalorder %s23, 0
      %s264 = scalar_select %p263, %s23, 0
      %s265 = sadd.s32 %s264, %s262
      %s266 = smul.addr %s265, 4
      %s267 = scalar_lea.vmem %s0, %s266
      %p268 = pneg %p53
      %p269 = pneg %p50
      %p270 = pneg %p74
      %p271 = pneg %p71
      %p272 = pneg %p95
      %p273 = pneg %p92
      %p274 = pneg %p116
      %p275 = pneg %p113
      %p276 = pneg %p137
      %p277 = pneg %p134
      %p278 = pneg %p158
      %p279 = pneg %p155
      %p280 = pneg %p179
      %p281 = pneg %p176
      %p282 = pneg %p207
      %p283 = pneg %p204
      %p284 = scmp.lt.s32.totalorder %s22, 1
      %s285 = scalar_select %p284, %s22, 1
      %p286 = scmp.lt.s32.totalorder %s23, 0
      %s287 = scalar_select %p286, %s23, 0
      %s288 = smul.addr %s285, 128
      %s289 = sadd.s32 %s287, %s288
      %s290 = smul.addr %s289, 8
      %s291 = scalar_lea.vmem %s7, %s290
      %p292 = scmp.lt.s32.totalorder %s22, 1
      %s293 = scalar_select %p292, %s22, 1
      %p294 = scmp.lt.s32.totalorder %s23, 0
      %s295 = scalar_select %p294, %s23, 0
      %s296 = sadd.s32 %s295, %s293
      %s297 = smul.addr %s296, 4
      %s298 = scalar_lea.vmem %s0, %s297
      %p299 = scmp.lt.s32.totalorder %s22, 1
      %s300 = scalar_select %p299, %s22, 1
      %p301 = scmp.lt.s32.totalorder %s23, 0
      %s302 = scalar_select %p301, %s23, 0
      %s303 = smul.addr %s300, 128
      %s304 = sadd.s32 %s302, %s303
      %s305 = smul.addr %s304, 8
      %s306 = scalar_lea.vmem %s7, %s305
      %v308 = vld [vmem:[%s298] sm:$0x7]
      %v309 = vld [vmem:[%s1] sm:$0xff]
      %v310 = vld [vmem:[%s1 + $0x8] sm:$0xff]
      %v311 = vld [vmem:[%s1 + $0x10] sm:$0xff]
      %v312 = vld [vmem:[%s1 + $0x18] sm:$0xff]
      %v313 = vld [vmem:[%s1 + $0x20] sm:$0xff]
      %v314 = vld [vmem:[%s1 + $0x28] sm:$0xff]
      %v315 = vld [vmem:[%s1 + $0x30] sm:$0xff]
      %v316 = vld [vmem:[%s1 + $0x38] sm:$0xff]
      %318 = vset.pattern.permute.xlu0 0
      %319 = vperm.xlu0 %318, %v309
      %v320 = vpop.permute.xlu0 %319
      %323 = vset.pattern.permute.xlu0 0
      %324 = vperm.xlu0 %323, %v310
      %v325 = vpop.permute.xlu0 %324
      %328 = vset.pattern.permute.xlu0 0
      %329 = vperm.xlu0 %328, %v311
      %v330 = vpop.permute.xlu0 %329
      %333 = vset.pattern.permute.xlu0 0
      %334 = vperm.xlu0 %333, %v312
      %v335 = vpop.permute.xlu0 %334
      %338 = vset.pattern.permute.xlu0 0
      %339 = vperm.xlu0 %338, %v313
      %v340 = vpop.permute.xlu0 %339
      %343 = vset.pattern.permute.xlu0 0
      %344 = vperm.xlu0 %343, %v314
      %v345 = vpop.permute.xlu0 %344
      %348 = vset.pattern.permute.xlu0 0
      %349 = vperm.xlu0 %348, %v315
      %v350 = vpop.permute.xlu0 %349
      %353 = vset.pattern.permute.xlu0 0
      %354 = vperm.xlu0 %353, %v316
      %v355 = vpop.permute.xlu0 %354
      %v357 = vperm.slane %v308, 0
      %v358 = vmul.f32 %v320, %v357
      %v359 = vmul.f32 %v325, %v357
      %v360 = vmul.f32 %v330, %v357
      %v361 = vmul.f32 %v335, %v357
      %v362 = vmul.f32 %v340, %v357
      %v363 = vmul.f32 %v345, %v357
      %v364 = vmul.f32 %v350, %v357
      %v365 = vmul.f32 %v355, %v357
      %366 = vset.pattern.permute.xlu0 1
      %367 = vperm.xlu0 %366, %v309
      %v368 = vpop.permute.xlu0 %367
      %370 = vset.pattern.permute.xlu0 1
      %371 = vperm.xlu0 %370, %v310
      %v372 = vpop.permute.xlu0 %371
      %374 = vset.pattern.permute.xlu0 1
      %375 = vperm.xlu0 %374, %v311
      %v376 = vpop.permute.xlu0 %375
      %378 = vset.pattern.permute.xlu0 1
      %379 = vperm.xlu0 %378, %v312
      %v380 = vpop.permute.xlu0 %379
      %382 = vset.pattern.permute.xlu0 1
      %383 = vperm.xlu0 %382, %v313
      %v384 = vpop.permute.xlu0 %383
      %386 = vset.pattern.permute.xlu0 1
      %387 = vperm.xlu0 %386, %v314
      %v388 = vpop.permute.xlu0 %387
      %390 = vset.pattern.permute.xlu0 1
      %391 = vperm.xlu0 %390, %v315
      %v392 = vpop.permute.xlu0 %391
      %394 = vset.pattern.permute.xlu0 1
      %395 = vperm.xlu0 %394, %v316
      %v396 = vpop.permute.xlu0 %395
      %v398 = vperm.slane %v308, 1
      %v399 = vmul.f32 %v368, %v398
      %v400 = vmul.f32 %v372, %v398
      %v401 = vmul.f32 %v376, %v398
      %v402 = vmul.f32 %v380, %v398
      %v403 = vmul.f32 %v384, %v398
      %v404 = vmul.f32 %v388, %v398
      %v405 = vmul.f32 %v392, %v398
      %v406 = vmul.f32 %v396, %v398
      %v407 = vadd.f32 %v358, %v399
      %v408 = vadd.f32 %v359, %v400
      %v409 = vadd.f32 %v360, %v401
      %v410 = vadd.f32 %v361, %v402
      %v411 = vadd.f32 %v362, %v403
      %v412 = vadd.f32 %v363, %v404
      %v413 = vadd.f32 %v364, %v405
      %v414 = vadd.f32 %v365, %v406
      %415 = vset.pattern.permute.xlu0 2
      %416 = vperm.xlu0 %415, %v309
      %v417 = vpop.permute.xlu0 %416
      %419 = vset.pattern.permute.xlu0 2
      %420 = vperm.xlu0 %419, %v310
      %v421 = vpop.permute.xlu0 %420
      %423 = vset.pattern.permute.xlu0 2
      %424 = vperm.xlu0 %423, %v311
      %v425 = vpop.permute.xlu0 %424
      %427 = vset.pattern.permute.xlu0 2
      %428 = vperm.xlu0 %427, %v312
      %v429 = vpop.permute.xlu0 %428
      %431 = vset.pattern.permute.xlu0 2
      %432 = vperm.xlu0 %431, %v313
      %v433 = vpop.permute.xlu0 %432
      %435 = vset.pattern.permute.xlu0 2
      %436 = vperm.xlu0 %435, %v314
      %v437 = vpop.permute.xlu0 %436
      %439 = vset.pattern.permute.xlu0 2
      %440 = vperm.xlu0 %439, %v315
      %v441 = vpop.permute.xlu0 %440
      %443 = vset.pattern.permute.xlu0 2
      %444 = vperm.xlu0 %443, %v316
      %v445 = vpop.permute.xlu0 %444
      %v447 = vperm.slane %v308, 2
      %v448 = vmul.f32 %v417, %v447
      %v449 = vmul.f32 %v421, %v447
      %v450 = vmul.f32 %v425, %v447
      %v451 = vmul.f32 %v429, %v447
      %v452 = vmul.f32 %v433, %v447
      %v453 = vmul.f32 %v437, %v447
      %v454 = vmul.f32 %v441, %v447
      %v455 = vmul.f32 %v445, %v447
      %v456 = vadd.f32 %v407, %v448
      %v457 = vadd.f32 %v408, %v449
      %v458 = vadd.f32 %v409, %v450
      %v459 = vadd.f32 %v410, %v451
      %v460 = vadd.f32 %v411, %v452
      %v461 = vadd.f32 %v412, %v453
      %v462 = vadd.f32 %v413, %v454
      %v463 = vadd.f32 %v414, %v455
      %v464 = vld [vmem:[%s2] sm:$0xff]
      %v465 = vld [vmem:[%s2 + $0x8] sm:$0xff]
      %v466 = vld [vmem:[%s2 + $0x10] sm:$0xff]
      %v467 = vld [vmem:[%s2 + $0x18] sm:$0xff]
      %v468 = vld [vmem:[%s2 + $0x20] sm:$0xff]
      %v469 = vld [vmem:[%s2 + $0x28] sm:$0xff]
      %v470 = vld [vmem:[%s2 + $0x30] sm:$0xff]
      %v471 = vld [vmem:[%s2 + $0x38] sm:$0xff]
      %473 = vset.pattern.permute.xlu0 0
      %474 = vperm.xlu0 %473, %v464
      %v475 = vpop.permute.xlu0 %474
      %478 = vset.pattern.permute.xlu0 0
      %479 = vperm.xlu0 %478, %v465
      %v480 = vpop.permute.xlu0 %479
      %483 = vset.pattern.permute.xlu0 0
      %484 = vperm.xlu0 %483, %v466
      %v485 = vpop.permute.xlu0 %484
      %488 = vset.pattern.permute.xlu0 0
      %489 = vperm.xlu0 %488, %v467
      %v490 = vpop.permute.xlu0 %489
      %493 = vset.pattern.permute.xlu0 0
      %494 = vperm.xlu0 %493, %v468
      %v495 = vpop.permute.xlu0 %494
      %498 = vset.pattern.permute.xlu0 0
      %499 = vperm.xlu0 %498, %v469
      %v500 = vpop.permute.xlu0 %499
      %503 = vset.pattern.permute.xlu0 0
      %504 = vperm.xlu0 %503, %v470
      %v505 = vpop.permute.xlu0 %504
      %508 = vset.pattern.permute.xlu0 0
      %509 = vperm.xlu0 %508, %v471
      %v510 = vpop.permute.xlu0 %509
      %v512 = vadd.f32 %v456, %v475
      %v513 = vadd.f32 %v457, %v480
      %v514 = vadd.f32 %v458, %v485
      %v515 = vadd.f32 %v459, %v490
      %v516 = vadd.f32 %v460, %v495
      %v517 = vadd.f32 %v461, %v500
      %v518 = vadd.f32 %v462, %v505
      %v519 = vadd.f32 %v463, %v510
      %v520 = vmax.f32 %v512, 0.0
      %v521 = vmax.f32 %v513, 0.0
      %v522 = vmax.f32 %v514, 0.0
      %v523 = vmax.f32 %v515, 0.0
      %v524 = vmax.f32 %v516, 0.0
      %v525 = vmax.f32 %v517, 0.0
      %v526 = vmax.f32 %v518, 0.0
      %v527 = vmax.f32 %v519, 0.0
      %v528 = vpack.c.bf16 %v521, %v520
      %v529 = vpack.c.bf16 %v523, %v522
      %v530 = vpack.c.bf16 %v525, %v524
      %v531 = vpack.c.bf16 %v527, %v526
      %v532 = vld [vmem:[%s3] sm:$0xf]
      %v533 = vld [vmem:[%s3 + $0x4] sm:$0xf]
      %v534 = vld [vmem:[%s3 + $0x8] sm:$0xf]
      %v535 = vld [vmem:[%s3 + $0xc] sm:$0xf]
      %v536 = vld [vmem:[%s3 + $0x10] sm:$0xf]
      %v537 = vld [vmem:[%s3 + $0x14] sm:$0xf]
      %v538 = vld [vmem:[%s3 + $0x18] sm:$0xf]
      %v539 = vld [vmem:[%s3 + $0x1c] sm:$0xf]
      %v540 = vld [vmem:[%s3 + $0x20] sm:$0xf]
      %v541 = vld [vmem:[%s3 + $0x24] sm:$0xf]
      %v542 = vld [vmem:[%s3 + $0x28] sm:$0xf]
      %v543 = vld [vmem:[%s3 + $0x2c] sm:$0xf]
      %v544 = vld [vmem:[%s3 + $0x30] sm:$0xf]
      %v545 = vld [vmem:[%s3 + $0x34] sm:$0xf]
      %v546 = vld [vmem:[%s3 + $0x38] sm:$0xf]
      %v547 = vld [vmem:[%s3 + $0x3c] sm:$0xf]
      %v548 = vld [vmem:[%s4] sm:$0xff]
      %v549 = vld [vmem:[%s4 + $0x8] sm:$0xff]
      %v550 = vld [vmem:[%s4 + $0x10] sm:$0xff]
      %v551 = vld [vmem:[%s4 + $0x18] sm:$0xff]
      %v552 = vld [vmem:[%s4 + $0x20] sm:$0xff]
      %v553 = vld [vmem:[%s4 + $0x28] sm:$0xff]
      %v554 = vld [vmem:[%s4 + $0x30] sm:$0xff]
      %v555 = vld [vmem:[%s4 + $0x38] sm:$0xff]
      %v556 = vld [vmem:[%s4 + $0x40] sm:$0xff]
      %v557 = vld [vmem:[%s4 + $0x48] sm:$0xff]
      %v558 = vld [vmem:[%s4 + $0x50] sm:$0xff]
      %v559 = vld [vmem:[%s4 + $0x58] sm:$0xff]
      %v560 = vld [vmem:[%s4 + $0x60] sm:$0xff]
      %v561 = vld [vmem:[%s4 + $0x68] sm:$0xff]
      %v562 = vld [vmem:[%s4 + $0x70] sm:$0xff]
      %v563 = vld [vmem:[%s4 + $0x78] sm:$0xff]
      %565 = vset.pattern.permute.xlu0 0
      %566 = vperm.xlu0 %565, %v548
      %v567 = vpop.permute.xlu0 %566
      %570 = vset.pattern.permute.xlu0 0
      %571 = vperm.xlu0 %570, %v549
      %v572 = vpop.permute.xlu0 %571
      %575 = vset.pattern.permute.xlu0 0
      %576 = vperm.xlu0 %575, %v550
      %v577 = vpop.permute.xlu0 %576
      %580 = vset.pattern.permute.xlu0 0
      %581 = vperm.xlu0 %580, %v551
      %v582 = vpop.permute.xlu0 %581
      %585 = vset.pattern.permute.xlu0 0
      %586 = vperm.xlu0 %585, %v552
      %v587 = vpop.permute.xlu0 %586
      %590 = vset.pattern.permute.xlu0 0
      %591 = vperm.xlu0 %590, %v553
      %v592 = vpop.permute.xlu0 %591
      %595 = vset.pattern.permute.xlu0 0
      %596 = vperm.xlu0 %595, %v554
      %v597 = vpop.permute.xlu0 %596
      %600 = vset.pattern.permute.xlu0 0
      %601 = vperm.xlu0 %600, %v555
      %v602 = vpop.permute.xlu0 %601
      %605 = vset.pattern.permute.xlu0 0
      %606 = vperm.xlu0 %605, %v556
      %v607 = vpop.permute.xlu0 %606
      %610 = vset.pattern.permute.xlu0 0
      %611 = vperm.xlu0 %610, %v557
      %v612 = vpop.permute.xlu0 %611
      %615 = vset.pattern.permute.xlu0 0
      %616 = vperm.xlu0 %615, %v558
      %v617 = vpop.permute.xlu0 %616
      %620 = vset.pattern.permute.xlu0 0
      %621 = vperm.xlu0 %620, %v559
      %v622 = vpop.permute.xlu0 %621
      %625 = vset.pattern.permute.xlu0 0
      %626 = vperm.xlu0 %625, %v560
      %v627 = vpop.permute.xlu0 %626
      %630 = vset.pattern.permute.xlu0 0
      %631 = vperm.xlu0 %630, %v561
      %v632 = vpop.permute.xlu0 %631
      %635 = vset.pattern.permute.xlu0 0
      %636 = vperm.xlu0 %635, %v562
      %v637 = vpop.permute.xlu0 %636
      %640 = vset.pattern.permute.xlu0 0
      %641 = vperm.xlu0 %640, %v563
      %v642 = vpop.permute.xlu0 %641
      %v660 = vunpack.c.l.b16 %v532
      %v661 = vunpack.c.l.b16 %v533
      %v662 = vunpack.c.l.b16 %v534
      %v663 = vunpack.c.l.b16 %v535
      %v664 = vunpack.c.l.b16 %v536
      %v665 = vunpack.c.l.b16 %v537
      %v666 = vunpack.c.l.b16 %v538
      %v667 = vunpack.c.l.b16 %v539
      %v668 = vunpack.c.l.b16 %v540
      %v669 = vunpack.c.l.b16 %v541
      %v670 = vunpack.c.l.b16 %v542
      %v671 = vunpack.c.l.b16 %v543
      %v672 = vunpack.c.l.b16 %v544
      %v673 = vunpack.c.l.b16 %v545
      %v674 = vunpack.c.l.b16 %v546
      %v675 = vunpack.c.l.b16 %v547
      %v676 = vpack.c.b16 %v661, %v660
      %v677 = vpack.c.b16 %v663, %v662
      %v678 = vpack.c.b16 %v665, %v664
      %v679 = vpack.c.b16 %v667, %v666
      %v680 = vpack.c.b16 %v669, %v668
      %v681 = vpack.c.b16 %v671, %v670
      %v682 = vpack.c.b16 %v673, %v672
      %v683 = vpack.c.b16 %v675, %v674
      %vm684 = vcmask 523264
      %v686 = vsel %vm684, %v676, 0
      %v689 = vsel %vm684, %v677, 0
      %v692 = vsel %vm684, %v678, 0
      %v695 = vsel %vm684, %v679, 0
      %v698 = vsel %vm684, %v680, 0
      %v701 = vsel %vm684, %v681, 0
      %v704 = vsel %vm684, %v682, 0
      %v707 = vsel %vm684, %v683, 0
      %709 = vmatpush.bf16.msra.mxu0 0
      %710 = vmatpush.bf16.msra.mxu0 0
      %711 = vmatpush.bf16.msra.mxu0 0
      %712 = vmatpush.bf16.msra.mxu0 0
      %713 = vmatpush.bf16.msra.mxu0 %v531
      %714 = vmatpush.bf16.msra.mxu0 %v530
      %715 = vmatpush.bf16.msra.mxu0 %v529
      %716 = vmatpush.bf16.msra.mxu0 %v528
      %717 = vmatmul.bf16.gmra.mxu0 %v686
      %v718 = vpop.f32.mrf.mxu0
      %v719 = vadd.f32 %v567, %v718
      %v720 = vpop.f32.mrf.mxu0
      %v721 = vadd.f32 %v572, %v720
      %722 = vmatmul.bf16.gmra.mxu0 %v689
      %v723 = vpop.f32.mrf.mxu0
      %v724 = vadd.f32 %v577, %v723
      %v725 = vpop.f32.mrf.mxu0
      %v726 = vadd.f32 %v582, %v725
      %727 = vmatmul.bf16.gmra.mxu0 %v692
      %v728 = vpop.f32.mrf.mxu0
      %v729 = vadd.f32 %v587, %v728
      %v730 = vpop.f32.mrf.mxu0
      %v731 = vadd.f32 %v592, %v730
      %732 = vmatmul.bf16.gmra.mxu0 %v695
      %v733 = vpop.f32.mrf.mxu0
      %v734 = vadd.f32 %v597, %v733
      %v735 = vpop.f32.mrf.mxu0
      %v736 = vadd.f32 %v602, %v735
      %737 = vmatmul.bf16.gmra.mxu0 %v698
      %v738 = vpop.f32.mrf.mxu0
      %v739 = vadd.f32 %v607, %v738
      %v740 = vpop.f32.mrf.mxu0
      %v741 = vadd.f32 %v612, %v740
      %742 = vmatmul.bf16.gmra.mxu0 %v701
      %v743 = vpop.f32.mrf.mxu0
      %v744 = vadd.f32 %v617, %v743
      %v745 = vpop.f32.mrf.mxu0
      %v746 = vadd.f32 %v622, %v745
      %747 = vmatmul.bf16.gmra.mxu0 %v704
      %v748 = vpop.f32.mrf.mxu0
      %v749 = vadd.f32 %v627, %v748
      %v750 = vpop.f32.mrf.mxu0
      %v751 = vadd.f32 %v632, %v750
      %752 = vmatmul.bf16.gmra.mxu0 %v707
      %v753 = vpop.f32.mrf.mxu0
      %v754 = vadd.f32 %v637, %v753
      %v755 = vpop.f32.mrf.mxu0
      %v756 = vadd.f32 %v642, %v755
      %757 = vdwg.mxu0
      %v758 = vmax.f32 %v719, 0.0
      %v759 = vmax.f32 %v721, 0.0
      %v760 = vmax.f32 %v724, 0.0
      %v761 = vmax.f32 %v726, 0.0
      %v762 = vmax.f32 %v729, 0.0
      %v763 = vmax.f32 %v731, 0.0
      %v764 = vmax.f32 %v734, 0.0
      %v765 = vmax.f32 %v736, 0.0
      %v766 = vmax.f32 %v739, 0.0
      %v767 = vmax.f32 %v741, 0.0
      %v768 = vmax.f32 %v744, 0.0
      %v769 = vmax.f32 %v746, 0.0
      %v770 = vmax.f32 %v749, 0.0
      %v771 = vmax.f32 %v751, 0.0
      %v772 = vmax.f32 %v754, 0.0
      %v773 = vmax.f32 %v756, 0.0
      %v774 = vpack.c.bf16 %v759, %v758
      %v775 = vpack.c.bf16 %v761, %v760
      %v776 = vpack.c.bf16 %v763, %v762
      %v777 = vpack.c.bf16 %v765, %v764
      %v778 = vpack.c.bf16 %v767, %v766
      %v779 = vpack.c.bf16 %v769, %v768
      %v780 = vpack.c.bf16 %v771, %v770
      %v781 = vpack.c.bf16 %v773, %v772
      %v782 = vld [vmem:[%s5] sm:$0xf]
      %v783 = vld [vmem:[%s5 + $0x4] sm:$0xf]
      %v784 = vld [vmem:[%s5 + $0x8] sm:$0xf]
      %v785 = vld [vmem:[%s5 + $0xc] sm:$0xf]
      %v786 = vld [vmem:[%s5 + $0x10] sm:$0xf]
      %v787 = vld [vmem:[%s5 + $0x14] sm:$0xf]
      %v788 = vld [vmem:[%s5 + $0x18] sm:$0xf]
      %v789 = vld [vmem:[%s5 + $0x1c] sm:$0xf]
      %v790 = vld [vmem:[%s5 + $0x20] sm:$0xf]
      %v791 = vld [vmem:[%s5 + $0x24] sm:$0xf]
      %v792 = vld [vmem:[%s5 + $0x28] sm:$0xf]
      %v793 = vld [vmem:[%s5 + $0x2c] sm:$0xf]
      %v794 = vld [vmem:[%s5 + $0x30] sm:$0xf]
      %v795 = vld [vmem:[%s5 + $0x34] sm:$0xf]
      %v796 = vld [vmem:[%s5 + $0x38] sm:$0xf]
      %v797 = vld [vmem:[%s5 + $0x3c] sm:$0xf]
      %v798 = vld [vmem:[%s5 + $0x40] sm:$0xf]
      %v799 = vld [vmem:[%s5 + $0x44] sm:$0xf]
      %v800 = vld [vmem:[%s5 + $0x48] sm:$0xf]
      %v801 = vld [vmem:[%s5 + $0x4c] sm:$0xf]
      %v802 = vld [vmem:[%s5 + $0x50] sm:$0xf]
      %v803 = vld [vmem:[%s5 + $0x54] sm:$0xf]
      %v804 = vld [vmem:[%s5 + $0x58] sm:$0xf]
      %v805 = vld [vmem:[%s5 + $0x5c] sm:$0xf]
      %v806 = vld [vmem:[%s5 + $0x60] sm:$0xf]
      %v807 = vld [vmem:[%s5 + $0x64] sm:$0xf]
      %v808 = vld [vmem:[%s5 + $0x68] sm:$0xf]
      %v809 = vld [vmem:[%s5 + $0x6c] sm:$0xf]
      %v810 = vld [vmem:[%s5 + $0x70] sm:$0xf]
      %v811 = vld [vmem:[%s5 + $0x74] sm:$0xf]
      %v812 = vld [vmem:[%s5 + $0x78] sm:$0xf]
      %v813 = vld [vmem:[%s5 + $0x7c] sm:$0xf]
      %v814 = vld [vmem:[%s6] sm:$0xff]
      %v815 = vld [vmem:[%s6 + $0x8] sm:$0xff]
      %v816 = vld [vmem:[%s6 + $0x10] sm:$0xff]
      %v817 = vld [vmem:[%s6 + $0x18] sm:$0xff]
      %v818 = vld [vmem:[%s6 + $0x20] sm:$0xff]
      %v819 = vld [vmem:[%s6 + $0x28] sm:$0xff]
      %v820 = vld [vmem:[%s6 + $0x30] sm:$0xff]
      %v821 = vld [vmem:[%s6 + $0x38] sm:$0xff]
      %v822 = vld [vmem:[%s6 + $0x40] sm:$0xff]
      %v823 = vld [vmem:[%s6 + $0x48] sm:$0xff]
      %v824 = vld [vmem:[%s6 + $0x50] sm:$0xff]
      %v825 = vld [vmem:[%s6 + $0x58] sm:$0xff]
      %v826 = vld [vmem:[%s6 + $0x60] sm:$0xff]
      %v827 = vld [vmem:[%s6 + $0x68] sm:$0xff]
      %v828 = vld [vmem:[%s6 + $0x70] sm:$0xff]
      %v829 = vld [vmem:[%s6 + $0x78] sm:$0xff]
      %v830 = vld [vmem:[%s6 + $0x80] sm:$0xff]
      %v831 = vld [vmem:[%s6 + $0x88] sm:$0xff]
      %v832 = vld [vmem:[%s6 + $0x90] sm:$0xff]
      %v833 = vld [vmem:[%s6 + $0x98] sm:$0xff]
      %v834 = vld [vmem:[%s6 + $0xa0] sm:$0xff]
      %v835 = vld [vmem:[%s6 + $0xa8] sm:$0xff]
      %v836 = vld [vmem:[%s6 + $0xb0] sm:$0xff]
      %v837 = vld [vmem:[%s6 + $0xb8] sm:$0xff]
      %v838 = vld [vmem:[%s6 + $0xc0] sm:$0xff]
      %v839 = vld [vmem:[%s6 + $0xc8] sm:$0xff]
      %v840 = vld [vmem:[%s6 + $0xd0] sm:$0xff]
      %v841 = vld [vmem:[%s6 + $0xd8] sm:$0xff]
      %v842 = vld [vmem:[%s6 + $0xe0] sm:$0xff]
      %v843 = vld [vmem:[%s6 + $0xe8] sm:$0xff]
      %v844 = vld [vmem:[%s6 + $0xf0] sm:$0xff]
      %v845 = vld [vmem:[%s6 + $0xf8] sm:$0xff]
      %847 = vset.pattern.permute.xlu0 0
      %848 = vperm.xlu0 %847, %v814
      %v849 = vpop.permute.xlu0 %848
      %852 = vset.pattern.permute.xlu0 0
      %853 = vperm.xlu0 %852, %v815
      %v854 = vpop.permute.xlu0 %853
      %857 = vset.pattern.permute.xlu0 0
      %858 = vperm.xlu0 %857, %v816
      %v859 = vpop.permute.xlu0 %858
      %862 = vset.pattern.permute.xlu0 0
      %863 = vperm.xlu0 %862, %v817
      %v864 = vpop.permute.xlu0 %863
      %867 = vset.pattern.permute.xlu0 0
      %868 = vperm.xlu0 %867, %v818
      %v869 = vpop.permute.xlu0 %868
      %872 = vset.pattern.permute.xlu0 0
      %873 = vperm.xlu0 %872, %v819
      %v874 = vpop.permute.xlu0 %873
      %877 = vset.pattern.permute.xlu0 0
      %878 = vperm.xlu0 %877, %v820
      %v879 = vpop.permute.xlu0 %878
      %882 = vset.pattern.permute.xlu0 0
      %883 = vperm.xlu0 %882, %v821
      %v884 = vpop.permute.xlu0 %883
      %887 = vset.pattern.permute.xlu0 0
      %888 = vperm.xlu0 %887, %v822
      %v889 = vpop.permute.xlu0 %888
      %892 = vset.pattern.permute.xlu0 0
      %893 = vperm.xlu0 %892, %v823
      %v894 = vpop.permute.xlu0 %893
      %897 = vset.pattern.permute.xlu0 0
      %898 = vperm.xlu0 %897, %v824
      %v899 = vpop.permute.xlu0 %898
      %902 = vset.pattern.permute.xlu0 0
      %903 = vperm.xlu0 %902, %v825
      %v904 = vpop.permute.xlu0 %903
      %907 = vset.pattern.permute.xlu0 0
      %908 = vperm.xlu0 %907, %v826
      %v909 = vpop.permute.xlu0 %908
      %912 = vset.pattern.permute.xlu0 0
      %913 = vperm.xlu0 %912, %v827
      %v914 = vpop.permute.xlu0 %913
      %917 = vset.pattern.permute.xlu0 0
      %918 = vperm.xlu0 %917, %v828
      %v919 = vpop.permute.xlu0 %918
      %922 = vset.pattern.permute.xlu0 0
      %923 = vperm.xlu0 %922, %v829
      %v924 = vpop.permute.xlu0 %923
      %927 = vset.pattern.permute.xlu0 0
      %928 = vperm.xlu0 %927, %v830
      %v929 = vpop.permute.xlu0 %928
      %932 = vset.pattern.permute.xlu0 0
      %933 = vperm.xlu0 %932, %v831
      %v934 = vpop.permute.xlu0 %933
      %937 = vset.pattern.permute.xlu0 0
      %938 = vperm.xlu0 %937, %v832
      %v939 = vpop.permute.xlu0 %938
      %942 = vset.pattern.permute.xlu0 0
      %943 = vperm.xlu0 %942, %v833
      %v944 = vpop.permute.xlu0 %943
      %947 = vset.pattern.permute.xlu0 0
      %948 = vperm.xlu0 %947, %v834
      %v949 = vpop.permute.xlu0 %948
      %952 = vset.pattern.permute.xlu0 0
      %953 = vperm.xlu0 %952, %v835
      %v954 = vpop.permute.xlu0 %953
      %957 = vset.pattern.permute.xlu0 0
      %958 = vperm.xlu0 %957, %v836
      %v959 = vpop.permute.xlu0 %958
      %962 = vset.pattern.permute.xlu0 0
      %963 = vperm.xlu0 %962, %v837
      %v964 = vpop.permute.xlu0 %963
      %967 = vset.pattern.permute.xlu0 0
      %968 = vperm.xlu0 %967, %v838
      %v969 = vpop.permute.xlu0 %968
      %972 = vset.pattern.permute.xlu0 0
      %973 = vperm.xlu0 %972, %v839
      %v974 = vpop.permute.xlu0 %973
      %977 = vset.pattern.permute.xlu0 0
      %978 = vperm.xlu0 %977, %v840
      %v979 = vpop.permute.xlu0 %978
      %982 = vset.pattern.permute.xlu0 0
      %983 = vperm.xlu0 %982, %v841
      %v984 = vpop.permute.xlu0 %983
      %987 = vset.pattern.permute.xlu0 0
      %988 = vperm.xlu0 %987, %v842
      %v989 = vpop.permute.xlu0 %988
      %992 = vset.pattern.permute.xlu0 0
      %993 = vperm.xlu0 %992, %v843
      %v994 = vpop.permute.xlu0 %993
      %997 = vset.pattern.permute.xlu0 0
      %998 = vperm.xlu0 %997, %v844
      %v999 = vpop.permute.xlu0 %998
      %1002 = vset.pattern.permute.xlu0 0
      %1003 = vperm.xlu0 %1002, %v845
      %v1004 = vpop.permute.xlu0 %1003
      %v1038 = vunpack.c.l.b16 %v782
      %v1039 = vunpack.c.l.b16 %v783
      %v1040 = vunpack.c.l.b16 %v784
      %v1041 = vunpack.c.l.b16 %v785
      %v1042 = vunpack.c.l.b16 %v786
      %v1043 = vunpack.c.l.b16 %v787
      %v1044 = vunpack.c.l.b16 %v788
      %v1045 = vunpack.c.l.b16 %v789
      %v1046 = vunpack.c.l.b16 %v790
      %v1047 = vunpack.c.l.b16 %v791
      %v1048 = vunpack.c.l.b16 %v792
      %v1049 = vunpack.c.l.b16 %v793
      %v1050 = vunpack.c.l.b16 %v794
      %v1051 = vunpack.c.l.b16 %v795
      %v1052 = vunpack.c.l.b16 %v796
      %v1053 = vunpack.c.l.b16 %v797
      %v1054 = vunpack.c.l.b16 %v798
      %v1055 = vunpack.c.l.b16 %v799
      %v1056 = vunpack.c.l.b16 %v800
      %v1057 = vunpack.c.l.b16 %v801
      %v1058 = vunpack.c.l.b16 %v802
      %v1059 = vunpack.c.l.b16 %v803
      %v1060 = vunpack.c.l.b16 %v804
      %v1061 = vunpack.c.l.b16 %v805
      %v1062 = vunpack.c.l.b16 %v806
      %v1063 = vunpack.c.l.b16 %v807
      %v1064 = vunpack.c.l.b16 %v808
      %v1065 = vunpack.c.l.b16 %v809
      %v1066 = vunpack.c.l.b16 %v810
      %v1067 = vunpack.c.l.b16 %v811
      %v1068 = vunpack.c.l.b16 %v812
      %v1069 = vunpack.c.l.b16 %v813
      %v1070 = vpack.c.b16 %v1039, %v1038
      %v1071 = vpack.c.b16 %v1041, %v1040
      %v1072 = vpack.c.b16 %v1043, %v1042
      %v1073 = vpack.c.b16 %v1045, %v1044
      %v1074 = vpack.c.b16 %v1047, %v1046
      %v1075 = vpack.c.b16 %v1049, %v1048
      %v1076 = vpack.c.b16 %v1051, %v1050
      %v1077 = vpack.c.b16 %v1053, %v1052
      %v1078 = vpack.c.b16 %v1055, %v1054
      %v1079 = vpack.c.b16 %v1057, %v1056
      %v1080 = vpack.c.b16 %v1059, %v1058
      %v1081 = vpack.c.b16 %v1061, %v1060
      %v1082 = vpack.c.b16 %v1063, %v1062
      %v1083 = vpack.c.b16 %v1065, %v1064
      %v1084 = vpack.c.b16 %v1067, %v1066
      %v1085 = vpack.c.b16 %v1069, %v1068
      %1102 = vmatpush.bf16.msra.mxu0 %v781
      %1103 = vmatpush.bf16.msra.mxu0 %v780
      %1104 = vmatpush.bf16.msra.mxu0 %v779
      %1105 = vmatpush.bf16.msra.mxu0 %v778
      %1106 = vmatpush.bf16.msra.mxu0 %v777
      %1107 = vmatpush.bf16.msra.mxu0 %v776
      %1108 = vmatpush.bf16.msra.mxu0 %v775
      %1109 = vmatpush.bf16.msra.mxu0 %v774
      %1110 = vmatmul.bf16.gmra.mxu0 %v1070
      %v1111 = vpop.f32.mrf.mxu0
      %v1112 = vadd.f32 %v849, %v1111
      %v1113 = vpop.f32.mrf.mxu0
      %v1114 = vadd.f32 %v854, %v1113
      %1115 = vmatmul.bf16.gmra.mxu0 %v1071
      %v1116 = vpop.f32.mrf.mxu0
      %v1117 = vadd.f32 %v859, %v1116
      %v1118 = vpop.f32.mrf.mxu0
      %v1119 = vadd.f32 %v864, %v1118
      %1120 = vmatmul.bf16.gmra.mxu0 %v1072
      %v1121 = vpop.f32.mrf.mxu0
      %v1122 = vadd.f32 %v869, %v1121
      %v1123 = vpop.f32.mrf.mxu0
      %v1124 = vadd.f32 %v874, %v1123
      %1125 = vmatmul.bf16.gmra.mxu0 %v1073
      %v1126 = vpop.f32.mrf.mxu0
      %v1127 = vadd.f32 %v879, %v1126
      %v1128 = vpop.f32.mrf.mxu0
      %v1129 = vadd.f32 %v884, %v1128
      %1130 = vmatmul.bf16.gmra.mxu0 %v1074
      %v1131 = vpop.f32.mrf.mxu0
      %v1132 = vadd.f32 %v889, %v1131
      %v1133 = vpop.f32.mrf.mxu0
      %v1134 = vadd.f32 %v894, %v1133
      %1135 = vmatmul.bf16.gmra.mxu0 %v1075
      %v1136 = vpop.f32.mrf.mxu0
      %v1137 = vadd.f32 %v899, %v1136
      %v1138 = vpop.f32.mrf.mxu0
      %v1139 = vadd.f32 %v904, %v1138
      %1140 = vmatmul.bf16.gmra.mxu0 %v1076
      %v1141 = vpop.f32.mrf.mxu0
      %v1142 = vadd.f32 %v909, %v1141
      %v1143 = vpop.f32.mrf.mxu0
      %v1144 = vadd.f32 %v914, %v1143
      %1145 = vmatmul.bf16.gmra.mxu0 %v1077
      %v1146 = vpop.f32.mrf.mxu0
      %v1147 = vadd.f32 %v919, %v1146
      %v1148 = vpop.f32.mrf.mxu0
      %v1149 = vadd.f32 %v924, %v1148
      %1150 = vmatmul.bf16.gmra.mxu0 %v1078
      %v1151 = vpop.f32.mrf.mxu0
      %v1152 = vadd.f32 %v929, %v1151
      %v1153 = vpop.f32.mrf.mxu0
      %v1154 = vadd.f32 %v934, %v1153
      %1155 = vmatmul.bf16.gmra.mxu0 %v1079
      %v1156 = vpop.f32.mrf.mxu0
      %v1157 = vadd.f32 %v939, %v1156
      %v1158 = vpop.f32.mrf.mxu0
      %v1159 = vadd.f32 %v944, %v1158
      %1160 = vmatmul.bf16.gmra.mxu0 %v1080
      %v1161 = vpop.f32.mrf.mxu0
      %v1162 = vadd.f32 %v949, %v1161
      %v1163 = vpop.f32.mrf.mxu0
      %v1164 = vadd.f32 %v954, %v1163
      %1165 = vmatmul.bf16.gmra.mxu0 %v1081
      %v1166 = vpop.f32.mrf.mxu0
      %v1167 = vadd.f32 %v959, %v1166
      %v1168 = vpop.f32.mrf.mxu0
      %v1169 = vadd.f32 %v964, %v1168
      %1170 = vmatmul.bf16.gmra.mxu0 %v1082
      %v1171 = vpop.f32.mrf.mxu0
      %v1172 = vadd.f32 %v969, %v1171
      %v1173 = vpop.f32.mrf.mxu0
      %v1174 = vadd.f32 %v974, %v1173
      %1175 = vmatmul.bf16.gmra.mxu0 %v1083
      %v1176 = vpop.f32.mrf.mxu0
      %v1177 = vadd.f32 %v979, %v1176
      %v1178 = vpop.f32.mrf.mxu0
      %v1179 = vadd.f32 %v984, %v1178
      %1180 = vmatmul.bf16.gmra.mxu0 %v1084
      %v1181 = vpop.f32.mrf.mxu0
      %v1182 = vadd.f32 %v989, %v1181
      %v1183 = vpop.f32.mrf.mxu0
      %v1184 = vadd.f32 %v994, %v1183
      %1185 = vmatmul.bf16.gmra.mxu0 %v1085
      %v1186 = vpop.f32.mrf.mxu0
      %v1187 = vadd.f32 %v999, %v1186
      %v1188 = vpop.f32.mrf.mxu0
      %v1189 = vadd.f32 %v1004, %v1188
      %1190 = vdwg.mxu0
      %vm1191 = vcmask 130048
      %1192 = vst.msk [vmem:[%s306] sm:$0xff] %vm1191, %v1112
      %1193 = vst.msk [vmem:[%s306 + $0x8] sm:$0xff] %vm1191, %v1114
      %1194 = vst.msk [vmem:[%s306 + $0x10] sm:$0xff] %vm1191, %v1117
      %1195 = vst.msk [vmem:[%s306 + $0x18] sm:$0xff] %vm1191, %v1119
      %1196 = vst.msk [vmem:[%s306 + $0x20] sm:$0xff] %vm1191, %v1122
      %1197 = vst.msk [vmem:[%s306 + $0x28] sm:$0xff] %vm1191, %v1124
      %1198 = vst.msk [vmem:[%s306 + $0x30] sm:$0xff] %vm1191, %v1127
      %1199 = vst.msk [vmem:[%s306 + $0x38] sm:$0xff] %vm1191, %v1129
      %1200 = vst.msk [vmem:[%s306 + $0x40] sm:$0xff] %vm1191, %v1132
      %1201 = vst.msk [vmem:[%s306 + $0x48] sm:$0xff] %vm1191, %v1134
      %1202 = vst.msk [vmem:[%s306 + $0x50] sm:$0xff] %vm1191, %v1137
      %1203 = vst.msk [vmem:[%s306 + $0x58] sm:$0xff] %vm1191, %v1139
      %1204 = vst.msk [vmem:[%s306 + $0x60] sm:$0xff] %vm1191, %v1142
      %1205 = vst.msk [vmem:[%s306 + $0x68] sm:$0xff] %vm1191, %v1144
      %1206 = vst.msk [vmem:[%s306 + $0x70] sm:$0xff] %vm1191, %v1147
      %1207 = vst.msk [vmem:[%s306 + $0x78] sm:$0xff] %vm1191, %v1149
      %1208 = vst.msk [vmem:[%s306 + $0x80] sm:$0xff] %vm1191, %v1152
      %1209 = vst.msk [vmem:[%s306 + $0x88] sm:$0xff] %vm1191, %v1154
      %1210 = vst.msk [vmem:[%s306 + $0x90] sm:$0xff] %vm1191, %v1157
      %1211 = vst.msk [vmem:[%s306 + $0x98] sm:$0xff] %vm1191, %v1159
      %1212 = vst.msk [vmem:[%s306 + $0xa0] sm:$0xff] %vm1191, %v1162
      %1213 = vst.msk [vmem:[%s306 + $0xa8] sm:$0xff] %vm1191, %v1164
      %1214 = vst.msk [vmem:[%s306 + $0xb0] sm:$0xff] %vm1191, %v1167
      %1215 = vst.msk [vmem:[%s306 + $0xb8] sm:$0xff] %vm1191, %v1169
      %1216 = vst.msk [vmem:[%s306 + $0xc0] sm:$0xff] %vm1191, %v1172
      %1217 = vst.msk [vmem:[%s306 + $0xc8] sm:$0xff] %vm1191, %v1174
      %1218 = vst.msk [vmem:[%s306 + $0xd0] sm:$0xff] %vm1191, %v1177
      %1219 = vst.msk [vmem:[%s306 + $0xd8] sm:$0xff] %vm1191, %v1179
      %1220 = vst.msk [vmem:[%s306 + $0xe0] sm:$0xff] %vm1191, %v1182
      %1221 = vst.msk [vmem:[%s306 + $0xe8] sm:$0xff] %vm1191, %v1184
      %1222 = vst.msk [vmem:[%s306 + $0xf0] sm:$0xff] %vm1191, %v1187
      %1223 = vst.msk [vmem:[%s306 + $0xf8] sm:$0xff] %vm1191, %v1189
      %v1224 = vld [vmem:[%s5 + $0x80] sm:$0xf]
      %v1225 = vld [vmem:[%s5 + $0x84] sm:$0xf]
      %v1226 = vld [vmem:[%s5 + $0x88] sm:$0xf]
      %v1227 = vld [vmem:[%s5 + $0x8c] sm:$0xf]
      %v1228 = vld [vmem:[%s5 + $0x90] sm:$0xf]
      %v1229 = vld [vmem:[%s5 + $0x94] sm:$0xf]
      %v1230 = vld [vmem:[%s5 + $0x98] sm:$0xf]
      %v1231 = vld [vmem:[%s5 + $0x9c] sm:$0xf]
      %v1232 = vld [vmem:[%s5 + $0xa0] sm:$0xf]
      %v1233 = vld [vmem:[%s5 + $0xa4] sm:$0xf]
      %v1234 = vld [vmem:[%s5 + $0xa8] sm:$0xf]
      %v1235 = vld [vmem:[%s5 + $0xac] sm:$0xf]
      %v1236 = vld [vmem:[%s5 + $0xb0] sm:$0xf]
      %v1237 = vld [vmem:[%s5 + $0xb4] sm:$0xf]
      %v1238 = vld [vmem:[%s5 + $0xb8] sm:$0xf]
      %v1239 = vld [vmem:[%s5 + $0xbc] sm:$0xf]
      %v1240 = vld [vmem:[%s5 + $0xc0] sm:$0xf]
      %v1241 = vld [vmem:[%s5 + $0xc4] sm:$0xf]
      %v1242 = vld [vmem:[%s5 + $0xc8] sm:$0xf]
      %v1243 = vld [vmem:[%s5 + $0xcc] sm:$0xf]
      %v1244 = vld [vmem:[%s5 + $0xd0] sm:$0xf]
      %v1245 = vld [vmem:[%s5 + $0xd4] sm:$0xf]
      %v1246 = vld [vmem:[%s5 + $0xd8] sm:$0xf]
      %v1247 = vld [vmem:[%s5 + $0xdc] sm:$0xf]
      %v1248 = vld [vmem:[%s5 + $0xe0] sm:$0xf]
      %v1249 = vld [vmem:[%s5 + $0xe4] sm:$0xf]
      %v1250 = vld [vmem:[%s5 + $0xe8] sm:$0xf]
      %v1251 = vld [vmem:[%s5 + $0xec] sm:$0xf]
      %v1252 = vld [vmem:[%s5 + $0xf0] sm:$0xf]
      %v1253 = vld [vmem:[%s5 + $0xf4] sm:$0xf]
      %v1254 = vld [vmem:[%s5 + $0xf8] sm:$0xf]
      %v1255 = vld [vmem:[%s5 + $0xfc] sm:$0xf]
      %v1256 = vld [vmem:[%s6 + $0x100] sm:$0xff]
      %v1257 = vld [vmem:[%s6 + $0x108] sm:$0xff]
      %v1258 = vld [vmem:[%s6 + $0x110] sm:$0xff]
      %v1259 = vld [vmem:[%s6 + $0x118] sm:$0xff]
      %v1260 = vld [vmem:[%s6 + $0x120] sm:$0xff]
      %v1261 = vld [vmem:[%s6 + $0x128] sm:$0xff]
      %v1262 = vld [vmem:[%s6 + $0x130] sm:$0xff]
      %v1263 = vld [vmem:[%s6 + $0x138] sm:$0xff]
      %v1264 = vld [vmem:[%s6 + $0x140] sm:$0xff]
      %v1265 = vld [vmem:[%s6 + $0x148] sm:$0xff]
      %v1266 = vld [vmem:[%s6 + $0x150] sm:$0xff]
      %v1267 = vld [vmem:[%s6 + $0x158] sm:$0xff]
      %v1268 = vld [vmem:[%s6 + $0x160] sm:$0xff]
      %v1269 = vld [vmem:[%s6 + $0x168] sm:$0xff]
      %v1270 = vld [vmem:[%s6 + $0x170] sm:$0xff]
      %v1271 = vld [vmem:[%s6 + $0x178] sm:$0xff]
      %v1272 = vld [vmem:[%s6 + $0x180] sm:$0xff]
      %v1273 = vld [vmem:[%s6 + $0x188] sm:$0xff]
      %v1274 = vld [vmem:[%s6 + $0x190] sm:$0xff]
      %v1275 = vld [vmem:[%s6 + $0x198] sm:$0xff]
      %v1276 = vld [vmem:[%s6 + $0x1a0] sm:$0xff]
      %v1277 = vld [vmem:[%s6 + $0x1a8] sm:$0xff]
      %v1278 = vld [vmem:[%s6 + $0x1b0] sm:$0xff]
      %v1279 = vld [vmem:[%s6 + $0x1b8] sm:$0xff]
      %v1280 = vld [vmem:[%s6 + $0x1c0] sm:$0xff]
      %v1281 = vld [vmem:[%s6 + $0x1c8] sm:$0xff]
      %v1282 = vld [vmem:[%s6 + $0x1d0] sm:$0xff]
      %v1283 = vld [vmem:[%s6 + $0x1d8] sm:$0xff]
      %v1284 = vld [vmem:[%s6 + $0x1e0] sm:$0xff]
      %v1285 = vld [vmem:[%s6 + $0x1e8] sm:$0xff]
      %v1286 = vld [vmem:[%s6 + $0x1f0] sm:$0xff]
      %v1287 = vld [vmem:[%s6 + $0x1f8] sm:$0xff]
      %1289 = vset.pattern.permute.xlu0 0
      %1290 = vperm.xlu0 %1289, %v1256
      %v1291 = vpop.permute.xlu0 %1290
      %1294 = vset.pattern.permute.xlu0 0
      %1295 = vperm.xlu0 %1294, %v1257
      %v1296 = vpop.permute.xlu0 %1295
      %1299 = vset.pattern.permute.xlu0 0
      %1300 = vperm.xlu0 %1299, %v1258
      %v1301 = vpop.permute.xlu0 %1300
      %1304 = vset.pattern.permute.xlu0 0
      %1305 = vperm.xlu0 %1304, %v1259
      %v1306 = vpop.permute.xlu0 %1305
      %1309 = vset.pattern.permute.xlu0 0
      %1310 = vperm.xlu0 %1309, %v1260
      %v1311 = vpop.permute.xlu0 %1310
      %1314 = vset.pattern.permute.xlu0 0
      %1315 = vperm.xlu0 %1314, %v1261
      %v1316 = vpop.permute.xlu0 %1315
      %1319 = vset.pattern.permute.xlu0 0
      %1320 = vperm.xlu0 %1319, %v1262
      %v1321 = vpop.permute.xlu0 %1320
      %1324 = vset.pattern.permute.xlu0 0
      %1325 = vperm.xlu0 %1324, %v1263
      %v1326 = vpop.permute.xlu0 %1325
      %1329 = vset.pattern.permute.xlu0 0
      %1330 = vperm.xlu0 %1329, %v1264
      %v1331 = vpop.permute.xlu0 %1330
      %1334 = vset.pattern.permute.xlu0 0
      %1335 = vperm.xlu0 %1334, %v1265
      %v1336 = vpop.permute.xlu0 %1335
      %1339 = vset.pattern.permute.xlu0 0
      %1340 = vperm.xlu0 %1339, %v1266
      %v1341 = vpop.permute.xlu0 %1340
      %1344 = vset.pattern.permute.xlu0 0
      %1345 = vperm.xlu0 %1344, %v1267
      %v1346 = vpop.permute.xlu0 %1345
      %1349 = vset.pattern.permute.xlu0 0
      %1350 = vperm.xlu0 %1349, %v1268
      %v1351 = vpop.permute.xlu0 %1350
      %1354 = vset.pattern.permute.xlu0 0
      %1355 = vperm.xlu0 %1354, %v1269
      %v1356 = vpop.permute.xlu0 %1355
      %1359 = vset.pattern.permute.xlu0 0
      %1360 = vperm.xlu0 %1359, %v1270
      %v1361 = vpop.permute.xlu0 %1360
      %1364 = vset.pattern.permute.xlu0 0
      %1365 = vperm.xlu0 %1364, %v1271
      %v1366 = vpop.permute.xlu0 %1365
      %1369 = vset.pattern.permute.xlu0 0
      %1370 = vperm.xlu0 %1369, %v1272
      %v1371 = vpop.permute.xlu0 %1370
      %1374 = vset.pattern.permute.xlu0 0
      %1375 = vperm.xlu0 %1374, %v1273
      %v1376 = vpop.permute.xlu0 %1375
      %1379 = vset.pattern.permute.xlu0 0
      %1380 = vperm.xlu0 %1379, %v1274
      %v1381 = vpop.permute.xlu0 %1380
      %1384 = vset.pattern.permute.xlu0 0
      %1385 = vperm.xlu0 %1384, %v1275
      %v1386 = vpop.permute.xlu0 %1385
      %1389 = vset.pattern.permute.xlu0 0
      %1390 = vperm.xlu0 %1389, %v1276
      %v1391 = vpop.permute.xlu0 %1390
      %1394 = vset.pattern.permute.xlu0 0
      %1395 = vperm.xlu0 %1394, %v1277
      %v1396 = vpop.permute.xlu0 %1395
      %1399 = vset.pattern.permute.xlu0 0
      %1400 = vperm.xlu0 %1399, %v1278
      %v1401 = vpop.permute.xlu0 %1400
      %1404 = vset.pattern.permute.xlu0 0
      %1405 = vperm.xlu0 %1404, %v1279
      %v1406 = vpop.permute.xlu0 %1405
      %1409 = vset.pattern.permute.xlu0 0
      %1410 = vperm.xlu0 %1409, %v1280
      %v1411 = vpop.permute.xlu0 %1410
      %1414 = vset.pattern.permute.xlu0 0
      %1415 = vperm.xlu0 %1414, %v1281
      %v1416 = vpop.permute.xlu0 %1415
      %1419 = vset.pattern.permute.xlu0 0
      %1420 = vperm.xlu0 %1419, %v1282
      %v1421 = vpop.permute.xlu0 %1420
      %1424 = vset.pattern.permute.xlu0 0
      %1425 = vperm.xlu0 %1424, %v1283
      %v1426 = vpop.permute.xlu0 %1425
      %1429 = vset.pattern.permute.xlu0 0
      %1430 = vperm.xlu0 %1429, %v1284
      %v1431 = vpop.permute.xlu0 %1430
      %1434 = vset.pattern.permute.xlu0 0
      %1435 = vperm.xlu0 %1434, %v1285
      %v1436 = vpop.permute.xlu0 %1435
      %1439 = vset.pattern.permute.xlu0 0
      %1440 = vperm.xlu0 %1439, %v1286
      %v1441 = vpop.permute.xlu0 %1440
      %1444 = vset.pattern.permute.xlu0 0
      %1445 = vperm.xlu0 %1444, %v1287
      %v1446 = vpop.permute.xlu0 %1445
      %v1480 = vunpack.c.l.b16 %v1224
      %v1481 = vunpack.c.l.b16 %v1225
      %v1482 = vunpack.c.l.b16 %v1226
      %v1483 = vunpack.c.l.b16 %v1227
      %v1484 = vunpack.c.l.b16 %v1228
      %v1485 = vunpack.c.l.b16 %v1229
      %v1486 = vunpack.c.l.b16 %v1230
      %v1487 = vunpack.c.l.b16 %v1231
      %v1488 = vunpack.c.l.b16 %v1232
      %v1489 = vunpack.c.l.b16 %v1233
      %v1490 = vunpack.c.l.b16 %v1234
      %v1491 = vunpack.c.l.b16 %v1235
      %v1492 = vunpack.c.l.b16 %v1236
      %v1493 = vunpack.c.l.b16 %v1237
      %v1494 = vunpack.c.l.b16 %v1238
      %v1495 = vunpack.c.l.b16 %v1239
      %v1496 = vunpack.c.l.b16 %v1240
      %v1497 = vunpack.c.l.b16 %v1241
      %v1498 = vunpack.c.l.b16 %v1242
      %v1499 = vunpack.c.l.b16 %v1243
      %v1500 = vunpack.c.l.b16 %v1244
      %v1501 = vunpack.c.l.b16 %v1245
      %v1502 = vunpack.c.l.b16 %v1246
      %v1503 = vunpack.c.l.b16 %v1247
      %v1504 = vunpack.c.l.b16 %v1248
      %v1505 = vunpack.c.l.b16 %v1249
      %v1506 = vunpack.c.l.b16 %v1250
      %v1507 = vunpack.c.l.b16 %v1251
      %v1508 = vunpack.c.l.b16 %v1252
      %v1509 = vunpack.c.l.b16 %v1253
      %v1510 = vunpack.c.l.b16 %v1254
      %v1511 = vunpack.c.l.b16 %v1255
      %v1512 = vpack.c.b16 %v1481, %v1480
      %v1513 = vpack.c.b16 %v1483, %v1482
      %v1514 = vpack.c.b16 %v1485, %v1484
      %v1515 = vpack.c.b16 %v1487, %v1486
      %v1516 = vpack.c.b16 %v1489, %v1488
      %v1517 = vpack.c.b16 %v1491, %v1490
      %v1518 = vpack.c.b16 %v1493, %v1492
      %v1519 = vpack.c.b16 %v1495, %v1494
      %v1520 = vpack.c.b16 %v1497, %v1496
      %v1521 = vpack.c.b16 %v1499, %v1498
      %v1522 = vpack.c.b16 %v1501, %v1500
      %v1523 = vpack.c.b16 %v1503, %v1502
      %v1524 = vpack.c.b16 %v1505, %v1504
      %v1525 = vpack.c.b16 %v1507, %v1506
      %v1526 = vpack.c.b16 %v1509, %v1508
      %v1527 = vpack.c.b16 %v1511, %v1510
      %1544 = vmatpush.bf16.msra.mxu0 %v781
      %1545 = vmatpush.bf16.msra.mxu0 %v780
      %1546 = vmatpush.bf16.msra.mxu0 %v779
      %1547 = vmatpush.bf16.msra.mxu0 %v778
      %1548 = vmatpush.bf16.msra.mxu0 %v777
      %1549 = vmatpush.bf16.msra.mxu0 %v776
      %1550 = vmatpush.bf16.msra.mxu0 %v775
      %1551 = vmatpush.bf16.msra.mxu0 %v774
      %1552 = vmatmul.bf16.gmra.mxu0 %v1512
      %v1553 = vpop.f32.mrf.mxu0
      %v1554 = vadd.f32 %v1291, %v1553
      %v1555 = vpop.f32.mrf.mxu0
      %v1556 = vadd.f32 %v1296, %v1555
      %1557 = vmatmul.bf16.gmra.mxu0 %v1513
      %v1558 = vpop.f32.mrf.mxu0
      %v1559 = vadd.f32 %v1301, %v1558
      %v1560 = vpop.f32.mrf.mxu0
      %v1561 = vadd.f32 %v1306, %v1560
      %1562 = vmatmul.bf16.gmra.mxu0 %v1514
      %v1563 = vpop.f32.mrf.mxu0
      %v1564 = vadd.f32 %v1311, %v1563
      %v1565 = vpop.f32.mrf.mxu0
      %v1566 = vadd.f32 %v1316, %v1565
      %1567 = vmatmul.bf16.gmra.mxu0 %v1515
      %v1568 = vpop.f32.mrf.mxu0
      %v1569 = vadd.f32 %v1321, %v1568
      %v1570 = vpop.f32.mrf.mxu0
      %v1571 = vadd.f32 %v1326, %v1570
      %1572 = vmatmul.bf16.gmra.mxu0 %v1516
      %v1573 = vpop.f32.mrf.mxu0
      %v1574 = vadd.f32 %v1331, %v1573
      %v1575 = vpop.f32.mrf.mxu0
      %v1576 = vadd.f32 %v1336, %v1575
      %1577 = vmatmul.bf16.gmra.mxu0 %v1517
      %v1578 = vpop.f32.mrf.mxu0
      %v1579 = vadd.f32 %v1341, %v1578
      %v1580 = vpop.f32.mrf.mxu0
      %v1581 = vadd.f32 %v1346, %v1580
      %1582 = vmatmul.bf16.gmra.mxu0 %v1518
      %v1583 = vpop.f32.mrf.mxu0
      %v1584 = vadd.f32 %v1351, %v1583
      %v1585 = vpop.f32.mrf.mxu0
      %v1586 = vadd.f32 %v1356, %v1585
      %1587 = vmatmul.bf16.gmra.mxu0 %v1519
      %v1588 = vpop.f32.mrf.mxu0
      %v1589 = vadd.f32 %v1361, %v1588
      %v1590 = vpop.f32.mrf.mxu0
      %v1591 = vadd.f32 %v1366, %v1590
      %1592 = vmatmul.bf16.gmra.mxu0 %v1520
      %v1593 = vpop.f32.mrf.mxu0
      %v1594 = vadd.f32 %v1371, %v1593
      %v1595 = vpop.f32.mrf.mxu0
      %v1596 = vadd.f32 %v1376, %v1595
      %1597 = vmatmul.bf16.gmra.mxu0 %v1521
      %v1598 = vpop.f32.mrf.mxu0
      %v1599 = vadd.f32 %v1381, %v1598
      %v1600 = vpop.f32.mrf.mxu0
      %v1601 = vadd.f32 %v1386, %v1600
      %1602 = vmatmul.bf16.gmra.mxu0 %v1522
      %v1603 = vpop.f32.mrf.mxu0
      %v1604 = vadd.f32 %v1391, %v1603
      %v1605 = vpop.f32.mrf.mxu0
      %v1606 = vadd.f32 %v1396, %v1605
      %1607 = vmatmul.bf16.gmra.mxu0 %v1523
      %v1608 = vpop.f32.mrf.mxu0
      %v1609 = vadd.f32 %v1401, %v1608
      %v1610 = vpop.f32.mrf.mxu0
      %v1611 = vadd.f32 %v1406, %v1610
      %1612 = vmatmul.bf16.gmra.mxu0 %v1524
      %v1613 = vpop.f32.mrf.mxu0
      %v1614 = vadd.f32 %v1411, %v1613
      %v1615 = vpop.f32.mrf.mxu0
      %v1616 = vadd.f32 %v1416, %v1615
      %1617 = vmatmul.bf16.gmra.mxu0 %v1525
      %v1618 = vpop.f32.mrf.mxu0
      %v1619 = vadd.f32 %v1421, %v1618
      %v1620 = vpop.f32.mrf.mxu0
      %v1621 = vadd.f32 %v1426, %v1620
      %1622 = vmatmul.bf16.gmra.mxu0 %v1526
      %v1623 = vpop.f32.mrf.mxu0
      %v1624 = vadd.f32 %v1431, %v1623
      %v1625 = vpop.f32.mrf.mxu0
      %v1626 = vadd.f32 %v1436, %v1625
      %1627 = vmatmul.bf16.gmra.mxu0 %v1527
      %v1628 = vpop.f32.mrf.mxu0
      %v1629 = vadd.f32 %v1441, %v1628
      %v1630 = vpop.f32.mrf.mxu0
      %v1631 = vadd.f32 %v1446, %v1630
      %1632 = vdwg.mxu0
      %1633 = vst.msk [vmem:[%s306 + $0x100] sm:$0xff] %vm1191, %v1554
      %1634 = vst.msk [vmem:[%s306 + $0x108] sm:$0xff] %vm1191, %v1556
      %1635 = vst.msk [vmem:[%s306 + $0x110] sm:$0xff] %vm1191, %v1559
      %1636 = vst.msk [vmem:[%s306 + $0x118] sm:$0xff] %vm1191, %v1561
      %1637 = vst.msk [vmem:[%s306 + $0x120] sm:$0xff] %vm1191, %v1564
      %1638 = vst.msk [vmem:[%s306 + $0x128] sm:$0xff] %vm1191, %v1566
      %1639 = vst.msk [vmem:[%s306 + $0x130] sm:$0xff] %vm1191, %v1569
      %1640 = vst.msk [vmem:[%s306 + $0x138] sm:$0xff] %vm1191, %v1571
      %1641 = vst.msk [vmem:[%s306 + $0x140] sm:$0xff] %vm1191, %v1574
      %1642 = vst.msk [vmem:[%s306 + $0x148] sm:$0xff] %vm1191, %v1576
      %1643 = vst.msk [vmem:[%s306 + $0x150] sm:$0xff] %vm1191, %v1579
      %1644 = vst.msk [vmem:[%s306 + $0x158] sm:$0xff] %vm1191, %v1581
      %1645 = vst.msk [vmem:[%s306 + $0x160] sm:$0xff] %vm1191, %v1584
      %1646 = vst.msk [vmem:[%s306 + $0x168] sm:$0xff] %vm1191, %v1586
      %1647 = vst.msk [vmem:[%s306 + $0x170] sm:$0xff] %vm1191, %v1589
      %1648 = vst.msk [vmem:[%s306 + $0x178] sm:$0xff] %vm1191, %v1591
      %1649 = vst.msk [vmem:[%s306 + $0x180] sm:$0xff] %vm1191, %v1594
      %1650 = vst.msk [vmem:[%s306 + $0x188] sm:$0xff] %vm1191, %v1596
      %1651 = vst.msk [vmem:[%s306 + $0x190] sm:$0xff] %vm1191, %v1599
      %1652 = vst.msk [vmem:[%s306 + $0x198] sm:$0xff] %vm1191, %v1601
      %1653 = vst.msk [vmem:[%s306 + $0x1a0] sm:$0xff] %vm1191, %v1604
      %1654 = vst.msk [vmem:[%s306 + $0x1a8] sm:$0xff] %vm1191, %v1606
      %1655 = vst.msk [vmem:[%s306 + $0x1b0] sm:$0xff] %vm1191, %v1609
      %1656 = vst.msk [vmem:[%s306 + $0x1b8] sm:$0xff] %vm1191, %v1611
      %1657 = vst.msk [vmem:[%s306 + $0x1c0] sm:$0xff] %vm1191, %v1614
      %1658 = vst.msk [vmem:[%s306 + $0x1c8] sm:$0xff] %vm1191, %v1616
      %1659 = vst.msk [vmem:[%s306 + $0x1d0] sm:$0xff] %vm1191, %v1619
      %1660 = vst.msk [vmem:[%s306 + $0x1d8] sm:$0xff] %vm1191, %v1621
      %1661 = vst.msk [vmem:[%s306 + $0x1e0] sm:$0xff] %vm1191, %v1624
      %1662 = vst.msk [vmem:[%s306 + $0x1e8] sm:$0xff] %vm1191, %v1626
      %1663 = vst.msk [vmem:[%s306 + $0x1f0] sm:$0xff] %vm1191, %v1629
      %1664 = vst.msk [vmem:[%s306 + $0x1f8] sm:$0xff] %vm1191, %v1631
      %v1665 = vld [vmem:[%s5 + $0x100] sm:$0xf]
      %v1666 = vld [vmem:[%s5 + $0x104] sm:$0xf]
      %v1667 = vld [vmem:[%s5 + $0x108] sm:$0xf]
      %v1668 = vld [vmem:[%s5 + $0x10c] sm:$0xf]
      %v1669 = vld [vmem:[%s5 + $0x110] sm:$0xf]
      %v1670 = vld [vmem:[%s5 + $0x114] sm:$0xf]
      %v1671 = vld [vmem:[%s5 + $0x118] sm:$0xf]
      %v1672 = vld [vmem:[%s5 + $0x11c] sm:$0xf]
      %v1673 = vld [vmem:[%s5 + $0x120] sm:$0xf]
      %v1674 = vld [vmem:[%s5 + $0x124] sm:$0xf]
      %v1675 = vld [vmem:[%s5 + $0x128] sm:$0xf]
      %v1676 = vld [vmem:[%s5 + $0x12c] sm:$0xf]
      %v1677 = vld [vmem:[%s5 + $0x130] sm:$0xf]
      %v1678 = vld [vmem:[%s5 + $0x134] sm:$0xf]
      %v1679 = vld [vmem:[%s5 + $0x138] sm:$0xf]
      %v1680 = vld [vmem:[%s5 + $0x13c] sm:$0xf]
      %v1681 = vld [vmem:[%s5 + $0x140] sm:$0xf]
      %v1682 = vld [vmem:[%s5 + $0x144] sm:$0xf]
      %v1683 = vld [vmem:[%s5 + $0x148] sm:$0xf]
      %v1684 = vld [vmem:[%s5 + $0x14c] sm:$0xf]
      %v1685 = vld [vmem:[%s5 + $0x150] sm:$0xf]
      %v1686 = vld [vmem:[%s5 + $0x154] sm:$0xf]
      %v1687 = vld [vmem:[%s5 + $0x158] sm:$0xf]
      %v1688 = vld [vmem:[%s5 + $0x15c] sm:$0xf]
      %v1689 = vld [vmem:[%s5 + $0x160] sm:$0xf]
      %v1690 = vld [vmem:[%s5 + $0x164] sm:$0xf]
      %v1691 = vld [vmem:[%s5 + $0x168] sm:$0xf]
      %v1692 = vld [vmem:[%s5 + $0x16c] sm:$0xf]
      %v1693 = vld [vmem:[%s5 + $0x170] sm:$0xf]
      %v1694 = vld [vmem:[%s5 + $0x174] sm:$0xf]
      %v1695 = vld [vmem:[%s5 + $0x178] sm:$0xf]
      %v1696 = vld [vmem:[%s5 + $0x17c] sm:$0xf]
      %v1697 = vld [vmem:[%s6 + $0x200] sm:$0xff]
      %v1698 = vld [vmem:[%s6 + $0x208] sm:$0xff]
      %v1699 = vld [vmem:[%s6 + $0x210] sm:$0xff]
      %v1700 = vld [vmem:[%s6 + $0x218] sm:$0xff]
      %v1701 = vld [vmem:[%s6 + $0x220] sm:$0xff]
      %v1702 = vld [vmem:[%s6 + $0x228] sm:$0xff]
      %v1703 = vld [vmem:[%s6 + $0x230] sm:$0xff]
      %v1704 = vld [vmem:[%s6 + $0x238] sm:$0xff]
      %v1705 = vld [vmem:[%s6 + $0x240] sm:$0xff]
      %v1706 = vld [vmem:[%s6 + $0x248] sm:$0xff]
      %v1707 = vld [vmem:[%s6 + $0x250] sm:$0xff]
      %v1708 = vld [vmem:[%s6 + $0x258] sm:$0xff]
      %v1709 = vld [vmem:[%s6 + $0x260] sm:$0xff]
      %v1710 = vld [vmem:[%s6 + $0x268] sm:$0xff]
      %v1711 = vld [vmem:[%s6 + $0x270] sm:$0xff]
      %v1712 = vld [vmem:[%s6 + $0x278] sm:$0xff]
      %v1713 = vld [vmem:[%s6 + $0x280] sm:$0xff]
      %v1714 = vld [vmem:[%s6 + $0x288] sm:$0xff]
      %v1715 = vld [vmem:[%s6 + $0x290] sm:$0xff]
      %v1716 = vld [vmem:[%s6 + $0x298] sm:$0xff]
      %v1717 = vld [vmem:[%s6 + $0x2a0] sm:$0xff]
      %v1718 = vld [vmem:[%s6 + $0x2a8] sm:$0xff]
      %v1719 = vld [vmem:[%s6 + $0x2b0] sm:$0xff]
      %v1720 = vld [vmem:[%s6 + $0x2b8] sm:$0xff]
      %v1721 = vld [vmem:[%s6 + $0x2c0] sm:$0xff]
      %v1722 = vld [vmem:[%s6 + $0x2c8] sm:$0xff]
      %v1723 = vld [vmem:[%s6 + $0x2d0] sm:$0xff]
      %v1724 = vld [vmem:[%s6 + $0x2d8] sm:$0xff]
      %v1725 = vld [vmem:[%s6 + $0x2e0] sm:$0xff]
      %v1726 = vld [vmem:[%s6 + $0x2e8] sm:$0xff]
      %v1727 = vld [vmem:[%s6 + $0x2f0] sm:$0xff]
      %v1728 = vld [vmem:[%s6 + $0x2f8] sm:$0xff]
      %1730 = vset.pattern.permute.xlu0 0
      %1731 = vperm.xlu0 %1730, %v1697
      %v1732 = vpop.permute.xlu0 %1731
      %1735 = vset.pattern.permute.xlu0 0
      %1736 = vperm.xlu0 %1735, %v1698
      %v1737 = vpop.permute.xlu0 %1736
      %1740 = vset.pattern.permute.xlu0 0
      %1741 = vperm.xlu0 %1740, %v1699
      %v1742 = vpop.permute.xlu0 %1741
      %1745 = vset.pattern.permute.xlu0 0
      %1746 = vperm.xlu0 %1745, %v1700
      %v1747 = vpop.permute.xlu0 %1746
      %1750 = vset.pattern.permute.xlu0 0
      %1751 = vperm.xlu0 %1750, %v1701
      %v1752 = vpop.permute.xlu0 %1751
      %1755 = vset.pattern.permute.xlu0 0
      %1756 = vperm.xlu0 %1755, %v1702
      %v1757 = vpop.permute.xlu0 %1756
      %1760 = vset.pattern.permute.xlu0 0
      %1761 = vperm.xlu0 %1760, %v1703
      %v1762 = vpop.permute.xlu0 %1761
      %1765 = vset.pattern.permute.xlu0 0
      %1766 = vperm.xlu0 %1765, %v1704
      %v1767 = vpop.permute.xlu0 %1766
      %1770 = vset.pattern.permute.xlu0 0
      %1771 = vperm.xlu0 %1770, %v1705
      %v1772 = vpop.permute.xlu0 %1771
      %1775 = vset.pattern.permute.xlu0 0
      %1776 = vperm.xlu0 %1775, %v1706
      %v1777 = vpop.permute.xlu0 %1776
      %1780 = vset.pattern.permute.xlu0 0
      %1781 = vperm.xlu0 %1780, %v1707
      %v1782 = vpop.permute.xlu0 %1781
      %1785 = vset.pattern.permute.xlu0 0
      %1786 = vperm.xlu0 %1785, %v1708
      %v1787 = vpop.permute.xlu0 %1786
      %1790 = vset.pattern.permute.xlu0 0
      %1791 = vperm.xlu0 %1790, %v1709
      %v1792 = vpop.permute.xlu0 %1791
      %1795 = vset.pattern.permute.xlu0 0
      %1796 = vperm.xlu0 %1795, %v1710
      %v1797 = vpop.permute.xlu0 %1796
      %1800 = vset.pattern.permute.xlu0 0
      %1801 = vperm.xlu0 %1800, %v1711
      %v1802 = vpop.permute.xlu0 %1801
      %1805 = vset.pattern.permute.xlu0 0
      %1806 = vperm.xlu0 %1805, %v1712
      %v1807 = vpop.permute.xlu0 %1806
      %1810 = vset.pattern.permute.xlu0 0
      %1811 = vperm.xlu0 %1810, %v1713
      %v1812 = vpop.permute.xlu0 %1811
      %1815 = vset.pattern.permute.xlu0 0
      %1816 = vperm.xlu0 %1815, %v1714
      %v1817 = vpop.permute.xlu0 %1816
      %1820 = vset.pattern.permute.xlu0 0
      %1821 = vperm.xlu0 %1820, %v1715
      %v1822 = vpop.permute.xlu0 %1821
      %1825 = vset.pattern.permute.xlu0 0
      %1826 = vperm.xlu0 %1825, %v1716
      %v1827 = vpop.permute.xlu0 %1826
      %1830 = vset.pattern.permute.xlu0 0
      %1831 = vperm.xlu0 %1830, %v1717
      %v1832 = vpop.permute.xlu0 %1831
      %1835 = vset.pattern.permute.xlu0 0
      %1836 = vperm.xlu0 %1835, %v1718
      %v1837 = vpop.permute.xlu0 %1836
      %1840 = vset.pattern.permute.xlu0 0
      %1841 = vperm.xlu0 %1840, %v1719
      %v1842 = vpop.permute.xlu0 %1841
      %1845 = vset.pattern.permute.xlu0 0
      %1846 = vperm.xlu0 %1845, %v1720
      %v1847 = vpop.permute.xlu0 %1846
      %1850 = vset.pattern.permute.xlu0 0
      %1851 = vperm.xlu0 %1850, %v1721
      %v1852 = vpop.permute.xlu0 %1851
      %1855 = vset.pattern.permute.xlu0 0
      %1856 = vperm.xlu0 %1855, %v1722
      %v1857 = vpop.permute.xlu0 %1856
      %1860 = vset.pattern.permute.xlu0 0
      %1861 = vperm.xlu0 %1860, %v1723
      %v1862 = vpop.permute.xlu0 %1861
      %1865 = vset.pattern.permute.xlu0 0
      %1866 = vperm.xlu0 %1865, %v1724
      %v1867 = vpop.permute.xlu0 %1866
      %1870 = vset.pattern.permute.xlu0 0
      %1871 = vperm.xlu0 %1870, %v1725
      %v1872 = vpop.permute.xlu0 %1871
      %1875 = vset.pattern.permute.xlu0 0
      %1876 = vperm.xlu0 %1875, %v1726
      %v1877 = vpop.permute.xlu0 %1876
      %1880 = vset.pattern.permute.xlu0 0
      %1881 = vperm.xlu0 %1880, %v1727
      %v1882 = vpop.permute.xlu0 %1881
      %1885 = vset.pattern.permute.xlu0 0
      %1886 = vperm.xlu0 %1885, %v1728
      %v1887 = vpop.permute.xlu0 %1886
      %v1921 = vunpack.c.l.b16 %v1665
      %v1922 = vunpack.c.l.b16 %v1666
      %v1923 = vunpack.c.l.b16 %v1667
      %v1924 = vunpack.c.l.b16 %v1668
      %v1925 = vunpack.c.l.b16 %v1669
      %v1926 = vunpack.c.l.b16 %v1670
      %v1927 = vunpack.c.l.b16 %v1671
      %v1928 = vunpack.c.l.b16 %v1672
      %v1929 = vunpack.c.l.b16 %v1673
      %v1930 = vunpack.c.l.b16 %v1674
      %v1931 = vunpack.c.l.b16 %v1675
      %v1932 = vunpack.c.l.b16 %v1676
      %v1933 = vunpack.c.l.b16 %v1677
      %v1934 = vunpack.c.l.b16 %v1678
      %v1935 = vunpack.c.l.b16 %v1679
      %v1936 = vunpack.c.l.b16 %v1680
      %v1937 = vunpack.c.l.b16 %v1681
      %v1938 = vunpack.c.l.b16 %v1682
      %v1939 = vunpack.c.l.b16 %v1683
      %v1940 = vunpack.c.l.b16 %v1684
      %v1941 = vunpack.c.l.b16 %v1685
      %v1942 = vunpack.c.l.b16 %v1686
      %v1943 = vunpack.c.l.b16 %v1687
      %v1944 = vunpack.c.l.b16 %v1688
      %v1945 = vunpack.c.l.b16 %v1689
      %v1946 = vunpack.c.l.b16 %v1690
      %v1947 = vunpack.c.l.b16 %v1691
      %v1948 = vunpack.c.l.b16 %v1692
      %v1949 = vunpack.c.l.b16 %v1693
      %v1950 = vunpack.c.l.b16 %v1694
      %v1951 = vunpack.c.l.b16 %v1695
      %v1952 = vunpack.c.l.b16 %v1696
      %v1953 = vpack.c.b16 %v1922, %v1921
      %v1954 = vpack.c.b16 %v1924, %v1923
      %v1955 = vpack.c.b16 %v1926, %v1925
      %v1956 = vpack.c.b16 %v1928, %v1927
      %v1957 = vpack.c.b16 %v1930, %v1929
      %v1958 = vpack.c.b16 %v1932, %v1931
      %v1959 = vpack.c.b16 %v1934, %v1933
      %v1960 = vpack.c.b16 %v1936, %v1935
      %v1961 = vpack.c.b16 %v1938, %v1937
      %v1962 = vpack.c.b16 %v1940, %v1939
      %v1963 = vpack.c.b16 %v1942, %v1941
      %v1964 = vpack.c.b16 %v1944, %v1943
      %v1965 = vpack.c.b16 %v1946, %v1945
      %v1966 = vpack.c.b16 %v1948, %v1947
      %v1967 = vpack.c.b16 %v1950, %v1949
      %v1968 = vpack.c.b16 %v1952, %v1951
      %1985 = vmatpush.bf16.msra.mxu0 %v781
      %1986 = vmatpush.bf16.msra.mxu0 %v780
      %1987 = vmatpush.bf16.msra.mxu0 %v779
      %1988 = vmatpush.bf16.msra.mxu0 %v778
      %1989 = vmatpush.bf16.msra.mxu0 %v777
      %1990 = vmatpush.bf16.msra.mxu0 %v776
      %1991 = vmatpush.bf16.msra.mxu0 %v775
      %1992 = vmatpush.bf16.msra.mxu0 %v774
      %1993 = vmatmul.bf16.gmra.mxu0 %v1953
      %v1994 = vpop.f32.mrf.mxu0
      %v1995 = vadd.f32 %v1732, %v1994
      %v1996 = vpop.f32.mrf.mxu0
      %v1997 = vadd.f32 %v1737, %v1996
      %1998 = vmatmul.bf16.gmra.mxu0 %v1954
      %v1999 = vpop.f32.mrf.mxu0
      %v2000 = vadd.f32 %v1742, %v1999
      %v2001 = vpop.f32.mrf.mxu0
      %v2002 = vadd.f32 %v1747, %v2001
      %2003 = vmatmul.bf16.gmra.mxu0 %v1955
      %v2004 = vpop.f32.mrf.mxu0
      %v2005 = vadd.f32 %v1752, %v2004
      %v2006 = vpop.f32.mrf.mxu0
      %v2007 = vadd.f32 %v1757, %v2006
      %2008 = vmatmul.bf16.gmra.mxu0 %v1956
      %v2009 = vpop.f32.mrf.mxu0
      %v2010 = vadd.f32 %v1762, %v2009
      %v2011 = vpop.f32.mrf.mxu0
      %v2012 = vadd.f32 %v1767, %v2011
      %2013 = vmatmul.bf16.gmra.mxu0 %v1957
      %v2014 = vpop.f32.mrf.mxu0
      %v2015 = vadd.f32 %v1772, %v2014
      %v2016 = vpop.f32.mrf.mxu0
      %v2017 = vadd.f32 %v1777, %v2016
      %2018 = vmatmul.bf16.gmra.mxu0 %v1958
      %v2019 = vpop.f32.mrf.mxu0
      %v2020 = vadd.f32 %v1782, %v2019
      %v2021 = vpop.f32.mrf.mxu0
      %v2022 = vadd.f32 %v1787, %v2021
      %2023 = vmatmul.bf16.gmra.mxu0 %v1959
      %v2024 = vpop.f32.mrf.mxu0
      %v2025 = vadd.f32 %v1792, %v2024
      %v2026 = vpop.f32.mrf.mxu0
      %v2027 = vadd.f32 %v1797, %v2026
      %2028 = vmatmul.bf16.gmra.mxu0 %v1960
      %v2029 = vpop.f32.mrf.mxu0
      %v2030 = vadd.f32 %v1802, %v2029
      %v2031 = vpop.f32.mrf.mxu0
      %v2032 = vadd.f32 %v1807, %v2031
      %2033 = vmatmul.bf16.gmra.mxu0 %v1961
      %v2034 = vpop.f32.mrf.mxu0
      %v2035 = vadd.f32 %v1812, %v2034
      %v2036 = vpop.f32.mrf.mxu0
      %v2037 = vadd.f32 %v1817, %v2036
      %2038 = vmatmul.bf16.gmra.mxu0 %v1962
      %v2039 = vpop.f32.mrf.mxu0
      %v2040 = vadd.f32 %v1822, %v2039
      %v2041 = vpop.f32.mrf.mxu0
      %v2042 = vadd.f32 %v1827, %v2041
      %2043 = vmatmul.bf16.gmra.mxu0 %v1963
      %v2044 = vpop.f32.mrf.mxu0
      %v2045 = vadd.f32 %v1832, %v2044
      %v2046 = vpop.f32.mrf.mxu0
      %v2047 = vadd.f32 %v1837, %v2046
      %2048 = vmatmul.bf16.gmra.mxu0 %v1964
      %v2049 = vpop.f32.mrf.mxu0
      %v2050 = vadd.f32 %v1842, %v2049
      %v2051 = vpop.f32.mrf.mxu0
      %v2052 = vadd.f32 %v1847, %v2051
      %2053 = vmatmul.bf16.gmra.mxu0 %v1965
      %v2054 = vpop.f32.mrf.mxu0
      %v2055 = vadd.f32 %v1852, %v2054
      %v2056 = vpop.f32.mrf.mxu0
      %v2057 = vadd.f32 %v1857, %v2056
      %2058 = vmatmul.bf16.gmra.mxu0 %v1966
      %v2059 = vpop.f32.mrf.mxu0
      %v2060 = vadd.f32 %v1862, %v2059
      %v2061 = vpop.f32.mrf.mxu0
      %v2062 = vadd.f32 %v1867, %v2061
      %2063 = vmatmul.bf16.gmra.mxu0 %v1967
      %v2064 = vpop.f32.mrf.mxu0
      %v2065 = vadd.f32 %v1872, %v2064
      %v2066 = vpop.f32.mrf.mxu0
      %v2067 = vadd.f32 %v1877, %v2066
      %2068 = vmatmul.bf16.gmra.mxu0 %v1968
      %v2069 = vpop.f32.mrf.mxu0
      %v2070 = vadd.f32 %v1882, %v2069
      %v2071 = vpop.f32.mrf.mxu0
      %v2072 = vadd.f32 %v1887, %v2071
      %2073 = vdwg.mxu0
      %2074 = vst.msk [vmem:[%s306 + $0x200] sm:$0xff] %vm1191, %v1995
      %2075 = vst.msk [vmem:[%s306 + $0x208] sm:$0xff] %vm1191, %v1997
      %2076 = vst.msk [vmem:[%s306 + $0x210] sm:$0xff] %vm1191, %v2000
      %2077 = vst.msk [vmem:[%s306 + $0x218] sm:$0xff] %vm1191, %v2002
      %2078 = vst.msk [vmem:[%s306 + $0x220] sm:$0xff] %vm1191, %v2005
      %2079 = vst.msk [vmem:[%s306 + $0x228] sm:$0xff] %vm1191, %v2007
      %2080 = vst.msk [vmem:[%s306 + $0x230] sm:$0xff] %vm1191, %v2010
      %2081 = vst.msk [vmem:[%s306 + $0x238] sm:$0xff] %vm1191, %v2012
      %2082 = vst.msk [vmem:[%s306 + $0x240] sm:$0xff] %vm1191, %v2015
      %2083 = vst.msk [vmem:[%s306 + $0x248] sm:$0xff] %vm1191, %v2017
      %2084 = vst.msk [vmem:[%s306 + $0x250] sm:$0xff] %vm1191, %v2020
      %2085 = vst.msk [vmem:[%s306 + $0x258] sm:$0xff] %vm1191, %v2022
      %2086 = vst.msk [vmem:[%s306 + $0x260] sm:$0xff] %vm1191, %v2025
      %2087 = vst.msk [vmem:[%s306 + $0x268] sm:$0xff] %vm1191, %v2027
      %2088 = vst.msk [vmem:[%s306 + $0x270] sm:$0xff] %vm1191, %v2030
      %2089 = vst.msk [vmem:[%s306 + $0x278] sm:$0xff] %vm1191, %v2032
      %2090 = vst.msk [vmem:[%s306 + $0x280] sm:$0xff] %vm1191, %v2035
      %2091 = vst.msk [vmem:[%s306 + $0x288] sm:$0xff] %vm1191, %v2037
      %2092 = vst.msk [vmem:[%s306 + $0x290] sm:$0xff] %vm1191, %v2040
      %2093 = vst.msk [vmem:[%s306 + $0x298] sm:$0xff] %vm1191, %v2042
      %2094 = vst.msk [vmem:[%s306 + $0x2a0] sm:$0xff] %vm1191, %v2045
      %2095 = vst.msk [vmem:[%s306 + $0x2a8] sm:$0xff] %vm1191, %v2047
      %2096 = vst.msk [vmem:[%s306 + $0x2b0] sm:$0xff] %vm1191, %v2050
      %2097 = vst.msk [vmem:[%s306 + $0x2b8] sm:$0xff] %vm1191, %v2052
      %2098 = vst.msk [vmem:[%s306 + $0x2c0] sm:$0xff] %vm1191, %v2055
      %2099 = vst.msk [vmem:[%s306 + $0x2c8] sm:$0xff] %vm1191, %v2057
      %2100 = vst.msk [vmem:[%s306 + $0x2d0] sm:$0xff] %vm1191, %v2060
      %2101 = vst.msk [vmem:[%s306 + $0x2d8] sm:$0xff] %vm1191, %v2062
      %2102 = vst.msk [vmem:[%s306 + $0x2e0] sm:$0xff] %vm1191, %v2065
      %2103 = vst.msk [vmem:[%s306 + $0x2e8] sm:$0xff] %vm1191, %v2067
      %2104 = vst.msk [vmem:[%s306 + $0x2f0] sm:$0xff] %vm1191, %v2070
      %2105 = vst.msk [vmem:[%s306 + $0x2f8] sm:$0xff] %vm1191, %v2072
      %v2106 = vld [vmem:[%s5 + $0x180] sm:$0xf]
      %v2107 = vld [vmem:[%s5 + $0x184] sm:$0xf]
      %v2108 = vld [vmem:[%s5 + $0x188] sm:$0xf]
      %v2109 = vld [vmem:[%s5 + $0x18c] sm:$0xf]
      %v2110 = vld [vmem:[%s5 + $0x190] sm:$0xf]
      %v2111 = vld [vmem:[%s5 + $0x194] sm:$0xf]
      %v2112 = vld [vmem:[%s5 + $0x198] sm:$0xf]
      %v2113 = vld [vmem:[%s5 + $0x19c] sm:$0xf]
      %v2114 = vld [vmem:[%s5 + $0x1a0] sm:$0xf]
      %v2115 = vld [vmem:[%s5 + $0x1a4] sm:$0xf]
      %v2116 = vld [vmem:[%s5 + $0x1a8] sm:$0xf]
      %v2117 = vld [vmem:[%s5 + $0x1ac] sm:$0xf]
      %v2118 = vld [vmem:[%s5 + $0x1b0] sm:$0xf]
      %v2119 = vld [vmem:[%s5 + $0x1b4] sm:$0xf]
      %v2120 = vld [vmem:[%s5 + $0x1b8] sm:$0xf]
      %v2121 = vld [vmem:[%s5 + $0x1bc] sm:$0xf]
      %v2122 = vld [vmem:[%s5 + $0x1c0] sm:$0xf]
      %v2123 = vld [vmem:[%s5 + $0x1c4] sm:$0xf]
      %v2124 = vld [vmem:[%s5 + $0x1c8] sm:$0xf]
      %v2125 = vld [vmem:[%s5 + $0x1cc] sm:$0xf]
      %v2126 = vld [vmem:[%s5 + $0x1d0] sm:$0xf]
      %v2127 = vld [vmem:[%s5 + $0x1d4] sm:$0xf]
      %v2128 = vld [vmem:[%s5 + $0x1d8] sm:$0xf]
      %v2129 = vld [vmem:[%s5 + $0x1dc] sm:$0xf]
      %v2130 = vld [vmem:[%s5 + $0x1e0] sm:$0xf]
      %v2131 = vld [vmem:[%s5 + $0x1e4] sm:$0xf]
      %v2132 = vld [vmem:[%s5 + $0x1e8] sm:$0xf]
      %v2133 = vld [vmem:[%s5 + $0x1ec] sm:$0xf]
      %v2134 = vld [vmem:[%s5 + $0x1f0] sm:$0xf]
      %v2135 = vld [vmem:[%s5 + $0x1f4] sm:$0xf]
      %v2136 = vld [vmem:[%s5 + $0x1f8] sm:$0xf]
      %v2137 = vld [vmem:[%s5 + $0x1fc] sm:$0xf]
      %v2138 = vld [vmem:[%s6 + $0x300] sm:$0xff]
      %v2139 = vld [vmem:[%s6 + $0x308] sm:$0xff]
      %v2140 = vld [vmem:[%s6 + $0x310] sm:$0xff]
      %v2141 = vld [vmem:[%s6 + $0x318] sm:$0xff]
      %v2142 = vld [vmem:[%s6 + $0x320] sm:$0xff]
      %v2143 = vld [vmem:[%s6 + $0x328] sm:$0xff]
      %v2144 = vld [vmem:[%s6 + $0x330] sm:$0xff]
      %v2145 = vld [vmem:[%s6 + $0x338] sm:$0xff]
      %v2146 = vld [vmem:[%s6 + $0x340] sm:$0xff]
      %v2147 = vld [vmem:[%s6 + $0x348] sm:$0xff]
      %v2148 = vld [vmem:[%s6 + $0x350] sm:$0xff]
      %v2149 = vld [vmem:[%s6 + $0x358] sm:$0xff]
      %v2150 = vld [vmem:[%s6 + $0x360] sm:$0xff]
      %v2151 = vld [vmem:[%s6 + $0x368] sm:$0xff]
      %v2152 = vld [vmem:[%s6 + $0x370] sm:$0xff]
      %v2153 = vld [vmem:[%s6 + $0x378] sm:$0xff]
      %v2154 = vld [vmem:[%s6 + $0x380] sm:$0xff]
      %v2155 = vld [vmem:[%s6 + $0x388] sm:$0xff]
      %v2156 = vld [vmem:[%s6 + $0x390] sm:$0xff]
      %v2157 = vld [vmem:[%s6 + $0x398] sm:$0xff]
      %v2158 = vld [vmem:[%s6 + $0x3a0] sm:$0xff]
      %v2159 = vld [vmem:[%s6 + $0x3a8] sm:$0xff]
      %v2160 = vld [vmem:[%s6 + $0x3b0] sm:$0xff]
      %v2161 = vld [vmem:[%s6 + $0x3b8] sm:$0xff]
      %v2162 = vld [vmem:[%s6 + $0x3c0] sm:$0xff]
      %v2163 = vld [vmem:[%s6 + $0x3c8] sm:$0xff]
      %v2164 = vld [vmem:[%s6 + $0x3d0] sm:$0xff]
      %v2165 = vld [vmem:[%s6 + $0x3d8] sm:$0xff]
      %v2166 = vld [vmem:[%s6 + $0x3e0] sm:$0xff]
      %v2167 = vld [vmem:[%s6 + $0x3e8] sm:$0xff]
      %v2168 = vld [vmem:[%s6 + $0x3f0] sm:$0xff]
      %v2169 = vld [vmem:[%s6 + $0x3f8] sm:$0xff]
      %2171 = vset.pattern.permute.xlu0 0
      %2172 = vperm.xlu0 %2171, %v2138
      %v2173 = vpop.permute.xlu0 %2172
      %2176 = vset.pattern.permute.xlu0 0
      %2177 = vperm.xlu0 %2176, %v2139
      %v2178 = vpop.permute.xlu0 %2177
      %2181 = vset.pattern.permute.xlu0 0
      %2182 = vperm.xlu0 %2181, %v2140
      %v2183 = vpop.permute.xlu0 %2182
      %2186 = vset.pattern.permute.xlu0 0
      %2187 = vperm.xlu0 %2186, %v2141
      %v2188 = vpop.permute.xlu0 %2187
      %2191 = vset.pattern.permute.xlu0 0
      %2192 = vperm.xlu0 %2191, %v2142
      %v2193 = vpop.permute.xlu0 %2192
      %2196 = vset.pattern.permute.xlu0 0
      %2197 = vperm.xlu0 %2196, %v2143
      %v2198 = vpop.permute.xlu0 %2197
      %2201 = vset.pattern.permute.xlu0 0
      %2202 = vperm.xlu0 %2201, %v2144
      %v2203 = vpop.permute.xlu0 %2202
      %2206 = vset.pattern.permute.xlu0 0
      %2207 = vperm.xlu0 %2206, %v2145
      %v2208 = vpop.permute.xlu0 %2207
      %2211 = vset.pattern.permute.xlu0 0
      %2212 = vperm.xlu0 %2211, %v2146
      %v2213 = vpop.permute.xlu0 %2212
      %2216 = vset.pattern.permute.xlu0 0
      %2217 = vperm.xlu0 %2216, %v2147
      %v2218 = vpop.permute.xlu0 %2217
      %2221 = vset.pattern.permute.xlu0 0
      %2222 = vperm.xlu0 %2221, %v2148
      %v2223 = vpop.permute.xlu0 %2222
      %2226 = vset.pattern.permute.xlu0 0
      %2227 = vperm.xlu0 %2226, %v2149
      %v2228 = vpop.permute.xlu0 %2227
      %2231 = vset.pattern.permute.xlu0 0
      %2232 = vperm.xlu0 %2231, %v2150
      %v2233 = vpop.permute.xlu0 %2232
      %2236 = vset.pattern.permute.xlu0 0
      %2237 = vperm.xlu0 %2236, %v2151
      %v2238 = vpop.permute.xlu0 %2237
      %2241 = vset.pattern.permute.xlu0 0
      %2242 = vperm.xlu0 %2241, %v2152
      %v2243 = vpop.permute.xlu0 %2242
      %2246 = vset.pattern.permute.xlu0 0
      %2247 = vperm.xlu0 %2246, %v2153
      %v2248 = vpop.permute.xlu0 %2247
      %2251 = vset.pattern.permute.xlu0 0
      %2252 = vperm.xlu0 %2251, %v2154
      %v2253 = vpop.permute.xlu0 %2252
      %2256 = vset.pattern.permute.xlu0 0
      %2257 = vperm.xlu0 %2256, %v2155
      %v2258 = vpop.permute.xlu0 %2257
      %2261 = vset.pattern.permute.xlu0 0
      %2262 = vperm.xlu0 %2261, %v2156
      %v2263 = vpop.permute.xlu0 %2262
      %2266 = vset.pattern.permute.xlu0 0
      %2267 = vperm.xlu0 %2266, %v2157
      %v2268 = vpop.permute.xlu0 %2267
      %2271 = vset.pattern.permute.xlu0 0
      %2272 = vperm.xlu0 %2271, %v2158
      %v2273 = vpop.permute.xlu0 %2272
      %2276 = vset.pattern.permute.xlu0 0
      %2277 = vperm.xlu0 %2276, %v2159
      %v2278 = vpop.permute.xlu0 %2277
      %2281 = vset.pattern.permute.xlu0 0
      %2282 = vperm.xlu0 %2281, %v2160
      %v2283 = vpop.permute.xlu0 %2282
      %2286 = vset.pattern.permute.xlu0 0
      %2287 = vperm.xlu0 %2286, %v2161
      %v2288 = vpop.permute.xlu0 %2287
      %2291 = vset.pattern.permute.xlu0 0
      %2292 = vperm.xlu0 %2291, %v2162
      %v2293 = vpop.permute.xlu0 %2292
      %2296 = vset.pattern.permute.xlu0 0
      %2297 = vperm.xlu0 %2296, %v2163
      %v2298 = vpop.permute.xlu0 %2297
      %2301 = vset.pattern.permute.xlu0 0
      %2302 = vperm.xlu0 %2301, %v2164
      %v2303 = vpop.permute.xlu0 %2302
      %2306 = vset.pattern.permute.xlu0 0
      %2307 = vperm.xlu0 %2306, %v2165
      %v2308 = vpop.permute.xlu0 %2307
      %2311 = vset.pattern.permute.xlu0 0
      %2312 = vperm.xlu0 %2311, %v2166
      %v2313 = vpop.permute.xlu0 %2312
      %2316 = vset.pattern.permute.xlu0 0
      %2317 = vperm.xlu0 %2316, %v2167
      %v2318 = vpop.permute.xlu0 %2317
      %2321 = vset.pattern.permute.xlu0 0
      %2322 = vperm.xlu0 %2321, %v2168
      %v2323 = vpop.permute.xlu0 %2322
      %2326 = vset.pattern.permute.xlu0 0
      %2327 = vperm.xlu0 %2326, %v2169
      %v2328 = vpop.permute.xlu0 %2327
      %v2362 = vunpack.c.l.b16 %v2106
      %v2363 = vunpack.c.l.b16 %v2107
      %v2364 = vunpack.c.l.b16 %v2108
      %v2365 = vunpack.c.l.b16 %v2109
      %v2366 = vunpack.c.l.b16 %v2110
      %v2367 = vunpack.c.l.b16 %v2111
      %v2368 = vunpack.c.l.b16 %v2112
      %v2369 = vunpack.c.l.b16 %v2113
      %v2370 = vunpack.c.l.b16 %v2114
      %v2371 = vunpack.c.l.b16 %v2115
      %v2372 = vunpack.c.l.b16 %v2116
      %v2373 = vunpack.c.l.b16 %v2117
      %v2374 = vunpack.c.l.b16 %v2118
      %v2375 = vunpack.c.l.b16 %v2119
      %v2376 = vunpack.c.l.b16 %v2120
      %v2377 = vunpack.c.l.b16 %v2121
      %v2378 = vunpack.c.l.b16 %v2122
      %v2379 = vunpack.c.l.b16 %v2123
      %v2380 = vunpack.c.l.b16 %v2124
      %v2381 = vunpack.c.l.b16 %v2125
      %v2382 = vunpack.c.l.b16 %v2126
      %v2383 = vunpack.c.l.b16 %v2127
      %v2384 = vunpack.c.l.b16 %v2128
      %v2385 = vunpack.c.l.b16 %v2129
      %v2386 = vunpack.c.l.b16 %v2130
      %v2387 = vunpack.c.l.b16 %v2131
      %v2388 = vunpack.c.l.b16 %v2132
      %v2389 = vunpack.c.l.b16 %v2133
      %v2390 = vunpack.c.l.b16 %v2134
      %v2391 = vunpack.c.l.b16 %v2135
      %v2392 = vunpack.c.l.b16 %v2136
      %v2393 = vunpack.c.l.b16 %v2137
      %v2394 = vpack.c.b16 %v2363, %v2362
      %v2395 = vpack.c.b16 %v2365, %v2364
      %v2396 = vpack.c.b16 %v2367, %v2366
      %v2397 = vpack.c.b16 %v2369, %v2368
      %v2398 = vpack.c.b16 %v2371, %v2370
      %v2399 = vpack.c.b16 %v2373, %v2372
      %v2400 = vpack.c.b16 %v2375, %v2374
      %v2401 = vpack.c.b16 %v2377, %v2376
      %v2402 = vpack.c.b16 %v2379, %v2378
      %v2403 = vpack.c.b16 %v2381, %v2380
      %v2404 = vpack.c.b16 %v2383, %v2382
      %v2405 = vpack.c.b16 %v2385, %v2384
      %v2406 = vpack.c.b16 %v2387, %v2386
      %v2407 = vpack.c.b16 %v2389, %v2388
      %v2408 = vpack.c.b16 %v2391, %v2390
      %v2409 = vpack.c.b16 %v2393, %v2392
      %2426 = vmatpush.bf16.msra.mxu0 %v781
      %2427 = vmatpush.bf16.msra.mxu0 %v780
      %2428 = vmatpush.bf16.msra.mxu0 %v779
      %2429 = vmatpush.bf16.msra.mxu0 %v778
      %2430 = vmatpush.bf16.msra.mxu0 %v777
      %2431 = vmatpush.bf16.msra.mxu0 %v776
      %2432 = vmatpush.bf16.msra.mxu0 %v775
      %2433 = vmatpush.bf16.msra.mxu0 %v774
      %2434 = vmatmul.bf16.gmra.mxu0 %v2394
      %v2435 = vpop.f32.mrf.mxu0
      %v2436 = vadd.f32 %v2173, %v2435
      %v2437 = vpop.f32.mrf.mxu0
      %v2438 = vadd.f32 %v2178, %v2437
      %2439 = vmatmul.bf16.gmra.mxu0 %v2395
      %v2440 = vpop.f32.mrf.mxu0
      %v2441 = vadd.f32 %v2183, %v2440
      %v2442 = vpop.f32.mrf.mxu0
      %v2443 = vadd.f32 %v2188, %v2442
      %2444 = vmatmul.bf16.gmra.mxu0 %v2396
      %v2445 = vpop.f32.mrf.mxu0
      %v2446 = vadd.f32 %v2193, %v2445
      %v2447 = vpop.f32.mrf.mxu0
      %v2448 = vadd.f32 %v2198, %v2447
      %2449 = vmatmul.bf16.gmra.mxu0 %v2397
      %v2450 = vpop.f32.mrf.mxu0
      %v2451 = vadd.f32 %v2203, %v2450
      %v2452 = vpop.f32.mrf.mxu0
      %v2453 = vadd.f32 %v2208, %v2452
      %2454 = vmatmul.bf16.gmra.mxu0 %v2398
      %v2455 = vpop.f32.mrf.mxu0
      %v2456 = vadd.f32 %v2213, %v2455
      %v2457 = vpop.f32.mrf.mxu0
      %v2458 = vadd.f32 %v2218, %v2457
      %2459 = vmatmul.bf16.gmra.mxu0 %v2399
      %v2460 = vpop.f32.mrf.mxu0
      %v2461 = vadd.f32 %v2223, %v2460
      %v2462 = vpop.f32.mrf.mxu0
      %v2463 = vadd.f32 %v2228, %v2462
      %2464 = vmatmul.bf16.gmra.mxu0 %v2400
      %v2465 = vpop.f32.mrf.mxu0
      %v2466 = vadd.f32 %v2233, %v2465
      %v2467 = vpop.f32.mrf.mxu0
      %v2468 = vadd.f32 %v2238, %v2467
      %2469 = vmatmul.bf16.gmra.mxu0 %v2401
      %v2470 = vpop.f32.mrf.mxu0
      %v2471 = vadd.f32 %v2243, %v2470
      %v2472 = vpop.f32.mrf.mxu0
      %v2473 = vadd.f32 %v2248, %v2472
      %2474 = vmatmul.bf16.gmra.mxu0 %v2402
      %v2475 = vpop.f32.mrf.mxu0
      %v2476 = vadd.f32 %v2253, %v2475
      %v2477 = vpop.f32.mrf.mxu0
      %v2478 = vadd.f32 %v2258, %v2477
      %2479 = vmatmul.bf16.gmra.mxu0 %v2403
      %v2480 = vpop.f32.mrf.mxu0
      %v2481 = vadd.f32 %v2263, %v2480
      %v2482 = vpop.f32.mrf.mxu0
      %v2483 = vadd.f32 %v2268, %v2482
      %2484 = vmatmul.bf16.gmra.mxu0 %v2404
      %v2485 = vpop.f32.mrf.mxu0
      %v2486 = vadd.f32 %v2273, %v2485
      %v2487 = vpop.f32.mrf.mxu0
      %v2488 = vadd.f32 %v2278, %v2487
      %2489 = vmatmul.bf16.gmra.mxu0 %v2405
      %v2490 = vpop.f32.mrf.mxu0
      %v2491 = vadd.f32 %v2283, %v2490
      %v2492 = vpop.f32.mrf.mxu0
      %v2493 = vadd.f32 %v2288, %v2492
      %2494 = vmatmul.bf16.gmra.mxu0 %v2406
      %v2495 = vpop.f32.mrf.mxu0
      %v2496 = vadd.f32 %v2293, %v2495
      %v2497 = vpop.f32.mrf.mxu0
      %v2498 = vadd.f32 %v2298, %v2497
      %2499 = vmatmul.bf16.gmra.mxu0 %v2407
      %v2500 = vpop.f32.mrf.mxu0
      %v2501 = vadd.f32 %v2303, %v2500
      %v2502 = vpop.f32.mrf.mxu0
      %v2503 = vadd.f32 %v2308, %v2502
      %2504 = vmatmul.bf16.gmra.mxu0 %v2408
      %v2505 = vpop.f32.mrf.mxu0
      %v2506 = vadd.f32 %v2313, %v2505
      %v2507 = vpop.f32.mrf.mxu0
      %v2508 = vadd.f32 %v2318, %v2507
      %2509 = vmatmul.bf16.gmra.mxu0 %v2409
      %v2510 = vpop.f32.mrf.mxu0
      %v2511 = vadd.f32 %v2323, %v2510
      %v2512 = vpop.f32.mrf.mxu0
      %v2513 = vadd.f32 %v2328, %v2512
      %2514 = vdwg.mxu0
      %2515 = vst.msk [vmem:[%s306 + $0x300] sm:$0xff] %vm1191, %v2436
      %2516 = vst.msk [vmem:[%s306 + $0x308] sm:$0xff] %vm1191, %v2438
      %2517 = vst.msk [vmem:[%s306 + $0x310] sm:$0xff] %vm1191, %v2441
      %2518 = vst.msk [vmem:[%s306 + $0x318] sm:$0xff] %vm1191, %v2443
      %2519 = vst.msk [vmem:[%s306 + $0x320] sm:$0xff] %vm1191, %v2446
      %2520 = vst.msk [vmem:[%s306 + $0x328] sm:$0xff] %vm1191, %v2448
      %2521 = vst.msk [vmem:[%s306 + $0x330] sm:$0xff] %vm1191, %v2451
      %2522 = vst.msk [vmem:[%s306 + $0x338] sm:$0xff] %vm1191, %v2453
      %2523 = vst.msk [vmem:[%s306 + $0x340] sm:$0xff] %vm1191, %v2456
      %2524 = vst.msk [vmem:[%s306 + $0x348] sm:$0xff] %vm1191, %v2458
      %2525 = vst.msk [vmem:[%s306 + $0x350] sm:$0xff] %vm1191, %v2461
      %2526 = vst.msk [vmem:[%s306 + $0x358] sm:$0xff] %vm1191, %v2463
      %2527 = vst.msk [vmem:[%s306 + $0x360] sm:$0xff] %vm1191, %v2466
      %2528 = vst.msk [vmem:[%s306 + $0x368] sm:$0xff] %vm1191, %v2468
      %2529 = vst.msk [vmem:[%s306 + $0x370] sm:$0xff] %vm1191, %v2471
      %2530 = vst.msk [vmem:[%s306 + $0x378] sm:$0xff] %vm1191, %v2473
      %2531 = vst.msk [vmem:[%s306 + $0x380] sm:$0xff] %vm1191, %v2476
      %2532 = vst.msk [vmem:[%s306 + $0x388] sm:$0xff] %vm1191, %v2478
      %2533 = vst.msk [vmem:[%s306 + $0x390] sm:$0xff] %vm1191, %v2481
      %2534 = vst.msk [vmem:[%s306 + $0x398] sm:$0xff] %vm1191, %v2483
      %2535 = vst.msk [vmem:[%s306 + $0x3a0] sm:$0xff] %vm1191, %v2486
      %2536 = vst.msk [vmem:[%s306 + $0x3a8] sm:$0xff] %vm1191, %v2488
      %2537 = vst.msk [vmem:[%s306 + $0x3b0] sm:$0xff] %vm1191, %v2491
      %2538 = vst.msk [vmem:[%s306 + $0x3b8] sm:$0xff] %vm1191, %v2493
      %2539 = vst.msk [vmem:[%s306 + $0x3c0] sm:$0xff] %vm1191, %v2496
      %2540 = vst.msk [vmem:[%s306 + $0x3c8] sm:$0xff] %vm1191, %v2498
      %2541 = vst.msk [vmem:[%s306 + $0x3d0] sm:$0xff] %vm1191, %v2501
      %2542 = vst.msk [vmem:[%s306 + $0x3d8] sm:$0xff] %vm1191, %v2503
      %2543 = vst.msk [vmem:[%s306 + $0x3e0] sm:$0xff] %vm1191, %v2506
      %2544 = vst.msk [vmem:[%s306 + $0x3e8] sm:$0xff] %vm1191, %v2508
      %2545 = vst.msk [vmem:[%s306 + $0x3f0] sm:$0xff] %vm1191, %v2511
      %2546 = vst.msk [vmem:[%s306 + $0x3f8] sm:$0xff] %vm1191, %v2513
      %p2547 = scmp.lt.s32.totalorder %s22, 1
      %s2548 = scalar_select %p2547, %s22, 1
      %p2549 = scmp.lt.s32.totalorder %s23, 0
      %s2550 = scalar_select %p2549, %s23, 0
      %s2551 = smul.addr %s2548, 128
      %s2552 = sadd.s32 %s2550, %s2551
      %s2553 = smul.addr %s2552, 8
      %s2554 = scalar_lea.vmem %s7, %s2553
      // Predicated region
      $region49: #{n_views_mlp_for_3d.1} parent=47 // pred_check
        %p2555 = pneg %p204
      $region50: #{n_views_mlp_for_3d.1} parent=47 // pred_check_branch
        %2557 = sbr.rel (%p2555) target = $region52
      $region51: #{n_views_mlp_for_3d.1} parent=47 // pred_region
        _
      $region52: #{n_views_mlp_for_3d.1} parent=47 // pred_fallthru
        _
    $region48: #{n_views_mlp_for_3d.1} parent=5 // pred_fallthru
      _
    %p2558 = scmp.le.s32.totalorder 2, %s13
    // Predicated region
    $region53: #{n_views_mlp_for_3d.1} parent=5 // pred_check
      %p2559 = pneg %p2558
    $region54: #{n_views_mlp_for_3d.1} parent=5 // pred_check_branch
      %2561 = sbr.rel (%p2559) target = $region56
    $region55: #{n_views_mlp_for_3d.1} parent=5 // pred_region
      %s2562 = ssub.s32 %s13, 2
      // Predicated region
      $region57: #{n_views_mlp_for_3d.1} parent=55 // pred_check
        %p2563 = pneg %p210
      $region58: #{n_views_mlp_for_3d.1} parent=55 // pred_check_branch
        %2565 = sbr.rel (%p2563) target = $region60
      $region59: #{n_views_mlp_for_3d.1} parent=55 // pred_region
        %p2566 = scmp.lt.s32.totalorder %s24, 1
        %s2567 = scalar_select %p2566, %s24, 1
        %p2568 = scmp.lt.s32.totalorder %s25, 0
        %s2569 = scalar_select %p2568, %s25, 0
        %s2570 = smul.addr %s2567, 128
        %s2571 = sadd.s32 %s2569, %s2570
        %s2572 = smul.addr %s2571, 8
        %s2573 = scalar_lea.vmem %s7, %s2572
      $region60: #{n_views_mlp_for_3d.1} parent=55 // pred_fallthru
        _
    $region56: #{n_views_mlp_for_3d.1} parent=5 // pred_fallthru
      _
  $region6: #{n_views_mlp_for_3d.1} parent=0 // loop_footer
    %s17 = sadd.s32 1, %s13
  $region7: #{n_views_mlp_for_3d.1} parent=0 // loop_footer_branch
    %12 = sbr.rel target = $region3
  $region8: #{n_views_mlp_for_3d.1} parent=0 // loop_exit
    _

</llo_original>
